<compile_context>
chip_gen: v7x
topology: tpu7x:2x2x1
jax: 0.10.0
libtpu: 0.0.40
codegen_flags: <defaults>
</compile_context>

<pallas_src>
import functools
import math

import jax
import jax.numpy as jnp
from jax import lax
from jax.experimental import pallas as pl
from jax.experimental.pallas import tpu as pltpu


def _cdc_hist_kernel(q_ref, w_ref, ctr_ref, wid_ref, binm_ref, msk_ref, cinv_ref,
                     o_ref, patch_ref, pool_ref, *, Wp):
    """One grid step == one batch image.  Channel-major, flat (padded) spatial layout.

    With Hp = H+2, Wp = W+2, L = Hp*Wp, PAD = Wp+1:
      q_ref    : (1, Cin, L + 2*PAD)  bf16  flattened zero-padded image + extra flat halo
      w_ref    : (CB, 9*Cin)          bf16  im2col weights, diff folded into the centre tap,
                                            rows repeated per bin (channel-major, bin-minor)
      ctr_ref  : (CB, 1)   f32  histogram bin centers
      wid_ref  : (CB, 1)   f32  histogram bin widths
      binm_ref : (CB, CB)  f32  block-diagonal ones (per-channel bin sum on the MXU)
      msk_ref  : (1, L)    f32  1 at interior positions of the padded grid, 0 on the pad ring
      cinv_ref : (1, L)    f32  1 / valid-count of the 3x3 pool (0 on the pad ring)
      o_ref    : (1, CB, L) f32 output on the padded grid (wrapper crops the ring)
      patch_ref: (9*Cin, L) bf16 im2col staging scratch
      pool_ref : (CB, L + 2*PAD) f32 halo scratch for the separable pool
    """
    Cin = q_ref.shape[1]
    CB, L = o_ref.shape[1], o_ref.shape[2]
    PAD = Wp + 1

    # ---- CDC conv: one bf16 im2col matmul over the flat padded image -----------------
    # tap (ky, kx) of the 3x3 conv is a flat shift of (ky-1)*Wp + (kx-1).
    tap = 0
    for ky in range(3):
        for kx in range(3):
            off = PAD + (ky - 1) * Wp + (kx - 1)
            patch_ref[tap * Cin:(tap + 1) * Cin, :] = q_ref[0, :, off:off + L]
            tap += 1
    acc = jnp.dot(w_ref[...], patch_ref[...],
                  preferred_element_type=jnp.float32)                   # (CB, L) f32
    # values on the padded-grid ring are garbage; they are masked out below.

    # ---- RBF histogram binning --------------------------------------------------------
    z = (acc + ctr_ref[...]) * wid_ref[...]
    xx = jnp.exp(-(z * z)) * msk_ref[...]                               # zero the pool's pad ring
    s = jnp.dot(binm_ref[...], xx, preferred_element_type=jnp.float32) + 1e-5
    xx = xx * pl.reciprocal(s, approx=True)                             # per-channel normalization

    # ---- 3x3 average pool, stride 1, pad 1, count_include_pad=False (separable) --------
    pool_ref[:, 0:PAD] = jnp.zeros((CB, PAD), jnp.float32)              # re-zero halo only;
    pool_ref[:, PAD + L:PAD + L + PAD] = jnp.zeros((CB, PAD), jnp.float32)  # interior fully written
    pool_ref[:, PAD:PAD + L] = xx
    ext = L + 2
    cs = (pool_ref[:, 0:ext]                                            # 3-tap column (H) sum,
          + pool_ref[:, Wp:Wp + ext]                                    # kept 1 wide on each side
          + pool_ref[:, 2 * Wp:2 * Wp + ext])                           # for the row pass
    pooled = cs[:, 0:L] + cs[:, 1:L + 1] + cs[:, 2:L + 2]               # 3-tap row (W) sum
    o_ref[0] = (pooled * cinv_ref[...]).astype(o_ref.dtype)


def conv2d_cd_hist(x_nchw, weight_oihw, centers, widths, *, theta=0.7, num_bins=1):
    """Forward pass of Conv2d_cd_hist.  NCHW in -> NCHW out, (N, Cout*num_bins, H, W)."""
    if math.fabs(theta - 0.0) < 1e-8:
        # TODO(synk): theta == 0 fast path (plain conv output, no histogram) not implemented.
        raise NotImplementedError("theta == 0 path not implemented")

    x = jnp.asarray(x_nchw)
    w = jnp.asarray(weight_oihw, jnp.float32)
    N, Cin, H, W = x.shape
    Cout = w.shape[0]
    CB = Cout * num_bins
    Hp, Wp = H + 2, W + 2
    L = Hp * Wp
    PAD = Wp + 1

    # ---- parameter plumbing (plain JAX) ----
    # Fold the central-difference term into the centre tap:
    #   conv3x3(w_folded) == conv3x3(w) - theta * conv1x1(w.sum(2,3))
    kdiff = jnp.sum(w, axis=(2, 3))                                      # (Cout, Cin)
    w = w.at[:, :, 1, 1].add(-theta * kdiff)
    w_im2col = jnp.transpose(w, (0, 2, 3, 1)).reshape(Cout, 9 * Cin)     # (o, ky, kx, ci) order
    w_cb = jnp.repeat(w_im2col, num_bins, axis=0).astype(jnp.bfloat16)   # (CB, 9*Cin)

    # Channel-major flat padded input (NCHW is already channel-major: no transpose needed).
    # TODO(synk): for large feature maps build the halo in-kernel instead of this wrapper pad.
    xb = x.astype(jnp.bfloat16)
    xp = jnp.pad(xb, ((0, 0), (0, 0), (1, 1), (1, 1)))                   # (N, Cin, Hp, Wp)
    q = jnp.pad(xp.reshape(N, Cin, L), ((0, 0), (0, 0), (PAD, PAD)))     # (N, Cin, L + 2*PAD)

    ctr = jnp.asarray(centers, jnp.float32).reshape(CB, 1)
    wid = jnp.asarray(widths, jnp.float32).reshape(CB, 1)
    # per-channel bin sum as a tiny block-diagonal matmul; fine while CB = dim*num_bins is small
    # (switch to a reshape-reduce for large CB).
    binm = jnp.kron(jnp.eye(Cout, dtype=jnp.float32),
                    jnp.ones((num_bins, num_bins), jnp.float32))         # (CB, CB)

    # Interior mask (the pool's zero-padding ring) and 1/valid-count, on the padded grid.
    r = jnp.arange(Hp)
    c = jnp.arange(Wp)
    in_r = ((r >= 1) & (r <= Hp - 2)).astype(jnp.float32)
    in_c = ((c >= 1) & (c <= Wp - 2)).astype(jnp.float32)
    msk2 = in_r[:, None] * in_c[None, :]                                 # (Hp, Wp)
    cnt_r = 3.0 - (r == 1) - (r == Hp - 2)
    cnt_c = 3.0 - (c == 1) - (c == Wp - 2)
    cinv2 = msk2 / (cnt_r[:, None] * cnt_c[None, :])
    msk = msk2.reshape(1, L)
    cinv = cinv2.reshape(1, L)

    kernel = functools.partial(_cdc_hist_kernel, Wp=Wp)

    grid_spec = pltpu.PrefetchScalarGridSpec(
        num_scalar_prefetch=0,
        grid=(N,),
        in_specs=[
            pl.BlockSpec((1, Cin, L + 2 * PAD), lambda n: (n, 0, 0)),
            pl.BlockSpec((CB, 9 * Cin), lambda n: (0, 0)),
            pl.BlockSpec((CB, 1), lambda n: (0, 0)),
            pl.BlockSpec((CB, 1), lambda n: (0, 0)),
            pl.BlockSpec((CB, CB), lambda n: (0, 0)),
            pl.BlockSpec((1, L), lambda n: (0, 0)),
            pl.BlockSpec((1, L), lambda n: (0, 0)),
        ],
        out_specs=pl.BlockSpec((1, CB, L), lambda n: (n, 0, 0)),
        scratch_shapes=[
            pltpu.VMEM((9 * Cin, L), jnp.bfloat16),       # im2col staging buffer
            pltpu.VMEM((CB, L + 2 * PAD), jnp.float32),   # pooling halo buffer
        ],
    )

    out_flat = pl.pallas_call(
        kernel,
        out_shape=jax.ShapeDtypeStruct((N, CB, L), jnp.float32),
        grid_spec=grid_spec,
        compiler_params=pltpu.CompilerParams(dimension_semantics=("parallel",)),
    )(q, w_cb, ctr, wid, binm, msk, cinv)

    # Output is already channel-major: just crop the pad ring (no transpose needed).
    return out_flat.reshape(N, CB, Hp, Wp)[:, :, 1:1 + H, 1:1 + W]


# ---------------------- pure-JAX reference (for validation) ----------------------
def _reference(x_nchw, weight_oihw, centers, widths, theta, num_bins):
    """Mirrors the kernel's bf16 MXU operand precision for the conv (f32 accumulation);
    all other math is f32."""
    N, Cin, H, W = x_nchw.shape
    Cout = weight_oihw.shape[0]
    w = weight_oihw.astype(jnp.float32)
    kdiff = jnp.sum(w, axis=(2, 3))
    w_folded = w.at[:, :, 1, 1].add(-theta * kdiff)      # == conv(w) - theta*conv1x1(kdiff)
    xb = x_nchw.astype(jnp.bfloat16).astype(jnp.float32)
    wb = w_folded.astype(jnp.bfloat16).astype(jnp.float32)

    x_nhwc = jnp.transpose(xb, (0, 2, 3, 1))
    w_hwio = jnp.transpose(wb, (2, 3, 1, 0))
    out = lax.conv_general_dilated(
        x_nhwc, w_hwio, window_strides=(1, 1), padding=((1, 1), (1, 1)),
        dimension_numbers=('NHWC', 'HWIO', 'NHWC'),
        precision=lax.Precision.HIGHEST)                                  # (N, H, W, Cout)

    xx = out[..., None] + centers.reshape(Cout, num_bins)
    xx = xx * widths.reshape(Cout, num_bins)
    xx = jnp.exp(-(xx ** 2))
    s = xx.sum(-1, keepdims=True) + 1e-5
    xx = (xx / s).reshape(N, H, W, Cout * num_bins)

    xpad = jnp.pad(xx, ((0, 0), (1, 1), (1, 1), (0, 0)))
    pooled = jnp.zeros_like(xx)
    for ky in range(3):
        for kx in range(3):
            pooled = pooled + xpad[:, ky:ky + H, kx:kx + W, :]
    a_h = 3 - (jnp.arange(H) == 0).astype(jnp.int32) - (jnp.arange(H) == H - 1).astype(jnp.int32)
    a_w = 3 - (jnp.arange(W) == 0).astype(jnp.int32) - (jnp.arange(W) == W - 1).astype(jnp.int32)
    cnt = (a_h[:, None] * a_w[None, :]).astype(jnp.float32)
    pooled = pooled / cnt[None, :, :, None]
    return jnp.transpose(pooled, (0, 3, 1, 2))


if __name__ == "__main__":
    # Small deterministic setup (in_channels == out_channels as in the adapter usage).
    B, C, H, W = 2, 16, 16, 16
    NUM_BINS = 2
    THETA = 0.7

    key = jax.random.PRNGKey(0)
    k1, k2, k3, k4 = jax.random.split(key, 4)
    x = jax.random.normal(k1, (B, C, H, W), jnp.float32)                    # NCHW conv input
    weight = jax.random.normal(k2, (C, C, 3, 3), jnp.float32) * 0.1         # Conv2d weight (OIHW)
    centers = jax.random.normal(k3, (C * NUM_BINS,), jnp.float32) * 0.5     # bin_centers_conv bias
    widths = jax.random.normal(k4, (C * NUM_BINS,), jnp.float32) * 0.5 + 1.0  # bin_widths_conv weight

    out = conv2d_cd_hist(x, weight, centers, widths, theta=THETA, num_bins=NUM_BINS)
    out = jax.block_until_ready(out)

    ref = jax.block_until_ready(_reference(x, weight, centers, widths, THETA, NUM_BINS))
    assert out.shape == (B, C * NUM_BINS, H, W), out.shape
    # Tolerance covers the approximate reciprocal and accumulation-order differences; the
    # reference mirrors the kernel's bf16 conv-operand precision (f32 accumulation).
    assert jnp.allclose(out, ref, atol=2e-2, rtol=2e-2), float(jnp.max(jnp.abs(out - ref)))

    print("KERNEL_OK")
</pallas_src>

<mosaic_0001>
module attributes {stable_mosaic.version = 11 : i64} {
  func.func @_cdc_hist_kernel(%arg0: i32, %arg1: memref<1x16x362xbf16, #tpu.memory_space<vmem>>, %arg2: memref<32x144xbf16, #tpu.memory_space<vmem>>, %arg3: memref<32x1xf32, #tpu.memory_space<vmem>>, %arg4: memref<32x1xf32, #tpu.memory_space<vmem>>, %arg5: memref<32x32xf32, #tpu.memory_space<vmem>>, %arg6: memref<1x324xf32, #tpu.memory_space<vmem>>, %arg7: memref<1x324xf32, #tpu.memory_space<vmem>>, %arg8: memref<1x32x324xf32, #tpu.memory_space<vmem>>, %arg9: memref<144x324xbf16, #tpu.memory_space<vmem>>, %arg10: memref<32x362xf32, #tpu.memory_space<vmem>>) attributes {dimension_semantics = [#tpu.dimension_semantics<parallel>], iteration_bounds = array<i64: 2>, scalar_prefetch = 0 : i64, scratch_operands = 2 : i64, tpu.core_type = #tpu.core_type<tc>, window_params = [{transform_indices = @transform_0, window_bounds = array<i64: 1, 16, 362>}, {pipeline_mode = #tpu.pipeline_mode<synchronous>, transform_indices = @transform_1, window_bounds = array<i64: 32, 144>}, {pipeline_mode = #tpu.pipeline_mode<synchronous>, transform_indices = @transform_2, window_bounds = array<i64: 32, 1>}, {pipeline_mode = #tpu.pipeline_mode<synchronous>, transform_indices = @transform_3, window_bounds = array<i64: 32, 1>}, {pipeline_mode = #tpu.pipeline_mode<synchronous>, transform_indices = @transform_4, window_bounds = array<i64: 32, 32>}, {pipeline_mode = #tpu.pipeline_mode<synchronous>, transform_indices = @transform_5, window_bounds = array<i64: 1, 324>}, {pipeline_mode = #tpu.pipeline_mode<synchronous>, transform_indices = @transform_6, window_bounds = array<i64: 1, 324>}, {transform_indices = @transform_7, window_bounds = array<i64: 1, 32, 324>}]} {
    %c0 = arith.constant 0 : index
    %c0_0 = arith.constant 0 : index
    %c0_1 = arith.constant 0 : index
    %0 = vector.load %arg1[%c0, %c0_0, %c0_1] : memref<1x16x362xbf16, #tpu.memory_space<vmem>>, vector<1x16x324xbf16>
    %1 = vector.shape_cast %0 : vector<1x16x324xbf16> to vector<16x324xbf16>
    %c0_2 = arith.constant 0 : index
    %c0_3 = arith.constant 0 : index
    %2 = vector.load %arg9[%c0_2, %c0_3] : memref<144x324xbf16, #tpu.memory_space<vmem>>, vector<16x324xbf16>
    tpu.vector_store %arg9[%c0_2, %c0_3], %1 {strides = array<i32>} : memref<144x324xbf16, #tpu.memory_space<vmem>>, vector<16x324xbf16>,
    %c0_4 = arith.constant 0 : index
    %c0_5 = arith.constant 0 : index
    %c1 = arith.constant 1 : index
    %3 = vector.load %arg1[%c0_4, %c0_5, %c1] : memref<1x16x362xbf16, #tpu.memory_space<vmem>>, vector<1x16x324xbf16>
    %4 = vector.shape_cast %3 : vector<1x16x324xbf16> to vector<16x324xbf16>
    %c16 = arith.constant 16 : index
    %c0_6 = arith.constant 0 : index
    %5 = vector.load %arg9[%c16, %c0_6] : memref<144x324xbf16, #tpu.memory_space<vmem>>, vector<16x324xbf16>
    tpu.vector_store %arg9[%c16, %c0_6], %4 {strides = array<i32>} : memref<144x324xbf16, #tpu.memory_space<vmem>>, vector<16x324xbf16>,
    %c0_7 = arith.constant 0 : index
    %c0_8 = arith.constant 0 : index
    %c2 = arith.constant 2 : index
    %6 = vector.load %arg1[%c0_7, %c0_8, %c2] : memref<1x16x362xbf16, #tpu.memory_space<vmem>>, vector<1x16x324xbf16>
    %7 = vector.shape_cast %6 : vector<1x16x324xbf16> to vector<16x324xbf16>
    %c32 = arith.constant 32 : index
    %c0_9 = arith.constant 0 : index
    %8 = vector.load %arg9[%c32, %c0_9] : memref<144x324xbf16, #tpu.memory_space<vmem>>, vector<16x324xbf16>
    tpu.vector_store %arg9[%c32, %c0_9], %7 {strides = array<i32>} : memref<144x324xbf16, #tpu.memory_space<vmem>>, vector<16x324xbf16>,
    %c0_10 = arith.constant 0 : index
    %c0_11 = arith.constant 0 : index
    %c18 = arith.constant 18 : index
    %9 = vector.load %arg1[%c0_10, %c0_11, %c18] : memref<1x16x362xbf16, #tpu.memory_space<vmem>>, vector<1x16x324xbf16>
    %10 = vector.shape_cast %9 : vector<1x16x324xbf16> to vector<16x324xbf16>
    %c48 = arith.constant 48 : index
    %c0_12 = arith.constant 0 : index
    %11 = vector.load %arg9[%c48, %c0_12] : memref<144x324xbf16, #tpu.memory_space<vmem>>, vector<16x324xbf16>
    tpu.vector_store %arg9[%c48, %c0_12], %10 {strides = array<i32>} : memref<144x324xbf16, #tpu.memory_space<vmem>>, vector<16x324xbf16>,
    %c0_13 = arith.constant 0 : index
    %c0_14 = arith.constant 0 : index
    %c19 = arith.constant 19 : index
    %12 = vector.load %arg1[%c0_13, %c0_14, %c19] : memref<1x16x362xbf16, #tpu.memory_space<vmem>>, vector<1x16x324xbf16>
    %13 = vector.shape_cast %12 : vector<1x16x324xbf16> to vector<16x324xbf16>
    %c64 = arith.constant 64 : index
    %c0_15 = arith.constant 0 : index
    %14 = vector.load %arg9[%c64, %c0_15] : memref<144x324xbf16, #tpu.memory_space<vmem>>, vector<16x324xbf16>
    tpu.vector_store %arg9[%c64, %c0_15], %13 {strides = array<i32>} : memref<144x324xbf16, #tpu.memory_space<vmem>>, vector<16x324xbf16>,
    %c0_16 = arith.constant 0 : index
    %c0_17 = arith.constant 0 : index
    %c20 = arith.constant 20 : index
    %15 = vector.load %arg1[%c0_16, %c0_17, %c20] : memref<1x16x362xbf16, #tpu.memory_space<vmem>>, vector<1x16x324xbf16>
    %16 = vector.shape_cast %15 : vector<1x16x324xbf16> to vector<16x324xbf16>
    %c80 = arith.constant 80 : index
    %c0_18 = arith.constant 0 : index
    %17 = vector.load %arg9[%c80, %c0_18] : memref<144x324xbf16, #tpu.memory_space<vmem>>, vector<16x324xbf16>
    tpu.vector_store %arg9[%c80, %c0_18], %16 {strides = array<i32>} : memref<144x324xbf16, #tpu.memory_space<vmem>>, vector<16x324xbf16>,
    %c0_19 = arith.constant 0 : index
    %c0_20 = arith.constant 0 : index
    %c36 = arith.constant 36 : index
    %18 = vector.load %arg1[%c0_19, %c0_20, %c36] : memref<1x16x362xbf16, #tpu.memory_space<vmem>>, vector<1x16x324xbf16>
    %19 = vector.shape_cast %18 : vector<1x16x324xbf16> to vector<16x324xbf16>
    %c96 = arith.constant 96 : index
    %c0_21 = arith.constant 0 : index
    %20 = vector.load %arg9[%c96, %c0_21] : memref<144x324xbf16, #tpu.memory_space<vmem>>, vector<16x324xbf16>
    tpu.vector_store %arg9[%c96, %c0_21], %19 {strides = array<i32>} : memref<144x324xbf16, #tpu.memory_space<vmem>>, vector<16x324xbf16>,
    %c0_22 = arith.constant 0 : index
    %c0_23 = arith.constant 0 : index
    %c37 = arith.constant 37 : index
    %21 = vector.load %arg1[%c0_22, %c0_23, %c37] : memref<1x16x362xbf16, #tpu.memory_space<vmem>>, vector<1x16x324xbf16>
    %22 = vector.shape_cast %21 : vector<1x16x324xbf16> to vector<16x324xbf16>
    %c112 = arith.constant 112 : index
    %c0_24 = arith.constant 0 : index
    %23 = vector.load %arg9[%c112, %c0_24] : memref<144x324xbf16, #tpu.memory_space<vmem>>, vector<16x324xbf16>
    tpu.vector_store %arg9[%c112, %c0_24], %22 {strides = array<i32>} : memref<144x324xbf16, #tpu.memory_space<vmem>>, vector<16x324xbf16>,
    %c0_25 = arith.constant 0 : index
    %c0_26 = arith.constant 0 : index
    %c38 = arith.constant 38 : index
    %24 = vector.load %arg1[%c0_25, %c0_26, %c38] : memref<1x16x362xbf16, #tpu.memory_space<vmem>>, vector<1x16x324xbf16>
    %25 = vector.shape_cast %24 : vector<1x16x324xbf16> to vector<16x324xbf16>
    %c128 = arith.constant 128 : index
    %c0_27 = arith.constant 0 : index
    %26 = vector.load %arg9[%c128, %c0_27] : memref<144x324xbf16, #tpu.memory_space<vmem>>, vector<16x324xbf16>
    tpu.vector_store %arg9[%c128, %c0_27], %25 {strides = array<i32>} : memref<144x324xbf16, #tpu.memory_space<vmem>>, vector<16x324xbf16>,
    %c0_28 = arith.constant 0 : index
    %c0_29 = arith.constant 0 : index
    %27 = vector.load %arg2[%c0_28, %c0_29] : memref<32x144xbf16, #tpu.memory_space<vmem>>, vector<32x144xbf16>
    %c0_30 = arith.constant 0 : index
    %c0_31 = arith.constant 0 : index
    %28 = vector.load %arg9[%c0_30, %c0_31] : memref<144x324xbf16, #tpu.memory_space<vmem>>, vector<144x324xbf16>
    %cst = arith.constant dense<0.000000e+00> : vector<32x324xf32>
    %29 = tpu.matmul %27, %28, %cst {dimension_numbers = #tpu.dot_dimension_numbers<[1], [0], [0], [1], [0, 0, 1, 1], [], []>} : vector<32x144xbf16>, vector<144x324xbf16>, vector<32x324xf32> -> vector<32x324xf32>
    %c0_32 = arith.constant 0 : index
    %c0_33 = arith.constant 0 : index
    %30 = vector.load %arg3[%c0_32, %c0_33] : memref<32x1xf32, #tpu.memory_space<vmem>>, vector<32x1xf32>
    %31 = vector.broadcast %30 : vector<32x1xf32> to vector<32x324xf32>
    %32 = arith.addf %29, %31 : vector<32x324xf32>
    %c0_34 = arith.constant 0 : index
    %c0_35 = arith.constant 0 : index
    %33 = vector.load %arg4[%c0_34, %c0_35] : memref<32x1xf32, #tpu.memory_space<vmem>>, vector<32x1xf32>
    %34 = vector.broadcast %33 : vector<32x1xf32> to vector<32x324xf32>
    %35 = arith.mulf %32, %34 : vector<32x324xf32>
    %36 = arith.mulf %35, %35 : vector<32x324xf32>
    %cst_36 = arith.constant 0.000000e+00 : f32
    %37 = vector.broadcast %cst_36 : f32 to vector<32x324xf32>
    %38 = arith.subf %37, %36 : vector<32x324xf32>
    %39 = math.exp %38 : vector<32x324xf32>
    %c0_37 = arith.constant 0 : index
    %c0_38 = arith.constant 0 : index
    %40 = vector.load %arg6[%c0_37, %c0_38] : memref<1x324xf32, #tpu.memory_space<vmem>>, vector<1x324xf32>
    %41 = vector.broadcast %40 : vector<1x324xf32> to vector<32x324xf32>
    %42 = arith.mulf %39, %41 : vector<32x324xf32>
    %c0_39 = arith.constant 0 : index
    %c0_40 = arith.constant 0 : index
    %43 = vector.load %arg5[%c0_39, %c0_40] : memref<32x32xf32, #tpu.memory_space<vmem>>, vector<32x32xf32>
    %cst_41 = arith.constant dense<0.000000e+00> : vector<32x324xf32>
    %44 = tpu.matmul %43, %42, %cst_41 {dimension_numbers = #tpu.dot_dimension_numbers<[1], [0], [0], [1], [0, 0, 1, 1], [], []>} : vector<32x32xf32>, vector<32x324xf32>, vector<32x324xf32> -> vector<32x324xf32>
    %cst_42 = arith.constant 9.99999974E-6 : f32
    %45 = vector.broadcast %cst_42 : f32 to vector<32x324xf32>
    %46 = arith.addf %44, %45 : vector<32x324xf32>
    %47 = tpu.reciprocal %46 {approx = true} : vector<32x324xf32> -> vector<32x324xf32>
    %48 = arith.mulf %42, %47 : vector<32x324xf32>
    %cst_43 = arith.constant 0.000000e+00 : f32
    %49 = vector.broadcast %cst_43 : f32 to vector<32x19xf32>
    %c0_44 = arith.constant 0 : index
    %c0_45 = arith.constant 0 : index
    %50 = vector.load %arg10[%c0_44, %c0_45] : memref<32x362xf32, #tpu.memory_space<vmem>>, vector<32x19xf32>
    tpu.vector_store %arg10[%c0_44, %c0_45], %49 {strides = array<i32>} : memref<32x362xf32, #tpu.memory_space<vmem>>, vector<32x19xf32>,
    %cst_46 = arith.constant 0.000000e+00 : f32
    %51 = vector.broadcast %cst_46 : f32 to vector<32x19xf32>
    %c0_47 = arith.constant 0 : index
    %c343 = arith.constant 343 : index
    %52 = vector.load %arg10[%c0_47, %c343] : memref<32x362xf32, #tpu.memory_space<vmem>>, vector<32x19xf32>
    tpu.vector_store %arg10[%c0_47, %c343], %51 {strides = array<i32>} : memref<32x362xf32, #tpu.memory_space<vmem>>, vector<32x19xf32>,
    %c0_48 = arith.constant 0 : index
    %c19_49 = arith.constant 19 : index
    %53 = vector.load %arg10[%c0_48, %c19_49] : memref<32x362xf32, #tpu.memory_space<vmem>>, vector<32x324xf32>
    tpu.vector_store %arg10[%c0_48, %c19_49], %48 {strides = array<i32>} : memref<32x362xf32, #tpu.memory_space<vmem>>, vector<32x324xf32>,
    %c0_50 = arith.constant 0 : index
    %c0_51 = arith.constant 0 : index
    %54 = vector.load %arg10[%c0_50, %c0_51] : memref<32x362xf32, #tpu.memory_space<vmem>>, vector<32x326xf32>
    %c0_52 = arith.constant 0 : index
    %c18_53 = arith.constant 18 : index
    %55 = vector.load %arg10[%c0_52, %c18_53] : memref<32x362xf32, #tpu.memory_space<vmem>>, vector<32x326xf32>
    %56 = arith.addf %54, %55 : vector<32x326xf32>
    %c0_54 = arith.constant 0 : index
    %c36_55 = arith.constant 36 : index
    %57 = vector.load %arg10[%c0_54, %c36_55] : memref<32x362xf32, #tpu.memory_space<vmem>>, vector<32x326xf32>
    %58 = arith.addf %56, %57 : vector<32x326xf32>
    %59 = vector.extract_strided_slice %58 {offsets = [0, 0], sizes = [32, 324], strides = [1, 1]} : vector<32x326xf32> to vector<32x324xf32>
    %60 = vector.extract_strided_slice %58 {offsets = [0, 1], sizes = [32, 324], strides = [1, 1]} : vector<32x326xf32> to vector<32x324xf32>
    %61 = arith.addf %59, %60 : vector<32x324xf32>
    %62 = vector.extract_strided_slice %58 {offsets = [0, 2], sizes = [32, 324], strides = [1, 1]} : vector<32x326xf32> to vector<32x324xf32>
    %63 = arith.addf %61, %62 : vector<32x324xf32>
    %c0_56 = arith.constant 0 : index
    %c0_57 = arith.constant 0 : index
    %64 = vector.load %arg7[%c0_56, %c0_57] : memref<1x324xf32, #tpu.memory_space<vmem>>, vector<1x324xf32>
    %65 = vector.broadcast %64 : vector<1x324xf32> to vector<32x324xf32>
    %66 = arith.mulf %63, %65 : vector<32x324xf32>
    %c0_58 = arith.constant 0 : index
    %c0_59 = arith.constant 0 : index
    %c0_60 = arith.constant 0 : index
    %67 = vector.load %arg8[%c0_58, %c0_59, %c0_60] : memref<1x32x324xf32, #tpu.memory_space<vmem>>, vector<1x32x324xf32>
    %68 = vector.shape_cast %67 : vector<1x32x324xf32> to vector<32x324xf32>
    %69 = vector.shape_cast %66 : vector<32x324xf32> to vector<1x32x324xf32>
    tpu.vector_store %arg8[%c0_58, %c0_59, %c0_60], %69 {strides = array<i32>} : memref<1x32x324xf32, #tpu.memory_space<vmem>>, vector<1x32x324xf32>,
    return
  }
  func.func @transform_0(%arg0: i32) -> (i32, i32, i32) {
    %c0_i32 = arith.constant 0 : i32
    %c0_i32_0 = arith.constant 0 : i32
    %c0_i32_1 = arith.constant 0 : i32
    return %arg0, %c0_i32, %c0_i32_0 : i32, i32, i32
  }
  func.func @transform_1(%arg0: i32) -> (i32, i32) {
    %c0_i32 = arith.constant 0 : i32
    %c0_i32_0 = arith.constant 0 : i32
    %c0_i32_1 = arith.constant 0 : i32
    return %c0_i32, %c0_i32_0 : i32, i32
  }
  func.func @transform_2(%arg0: i32) -> (i32, i32) {
    %c0_i32 = arith.constant 0 : i32
    %c0_i32_0 = arith.constant 0 : i32
    %c0_i32_1 = arith.constant 0 : i32
    return %c0_i32, %c0_i32_0 : i32, i32
  }
  func.func @transform_3(%arg0: i32) -> (i32, i32) {
    %c0_i32 = arith.constant 0 : i32
    %c0_i32_0 = arith.constant 0 : i32
    %c0_i32_1 = arith.constant 0 : i32
    return %c0_i32, %c0_i32_0 : i32, i32
  }
  func.func @transform_4(%arg0: i32) -> (i32, i32) {
    %c0_i32 = arith.constant 0 : i32
    %c0_i32_0 = arith.constant 0 : i32
    %c0_i32_1 = arith.constant 0 : i32
    return %c0_i32, %c0_i32_0 : i32, i32
  }
  func.func @transform_5(%arg0: i32) -> (i32, i32) {
    %c0_i32 = arith.constant 0 : i32
    %c0_i32_0 = arith.constant 0 : i32
    %c0_i32_1 = arith.constant 0 : i32
    return %c0_i32, %c0_i32_0 : i32, i32
  }
  func.func @transform_6(%arg0: i32) -> (i32, i32) {
    %c0_i32 = arith.constant 0 : i32
    %c0_i32_0 = arith.constant 0 : i32
    %c0_i32_1 = arith.constant 0 : i32
    return %c0_i32, %c0_i32_0 : i32, i32
  }
  func.func @transform_7(%arg0: i32) -> (i32, i32, i32) {
    %c0_i32 = arith.constant 0 : i32
    %c0_i32_0 = arith.constant 0 : i32
    %c0_i32_1 = arith.constant 0 : i32
    return %arg0, %c0_i32, %c0_i32_0 : i32, i32, i32
  }
}

</mosaic_0001>

<llo_original>
// kernel: tpu_custom_call.1
$region0: #{tpu_custom_call.1}
  #allocation0 [shape = 'u32[]', space=smem, size = 0x4, offset = 0x4, fixed_abs, tag = 'smem constant byte address 0x4 - core index']
  #allocation1 [shape = 'u32[144,128]{1,0:T(1,128)}', space=vmem, size = 0x12000, scoped, tag = 'internal scratch']
  #allocation2 [shape = 'bf16[144,324]{1,0:T(16,128)(2,1)}', space=vmem, size = 0x1b000, scoped, tag = 'scratch operand']
  #allocation3 [shape = 'f32[32,362]{1,0:T(8,128)}', space=vmem, size = 0xc000, scoped, tag = 'scratch operand']
  %s0 = inlined_call_operand.vmem [shape: bf16[2,16,362], index: 0, kind: input, shape index: {}]
  %s1 = inlined_call_operand.hbm [shape: bf16[32,144], index: 1, kind: input, shape index: {}]
  %s2 = inlined_call_operand.vmem [shape: f32[32,1], index: 2, kind: input, shape index: {}]
  %s3 = inlined_call_operand.vmem [shape: f32[32,1], index: 3, kind: input, shape index: {}]
  %s4 = inlined_call_operand.vmem [shape: f32[32,32], index: 4, kind: input, shape index: {}]
  %s5 = inlined_call_operand.vmem [shape: f32[1,324], index: 5, kind: input, shape index: {}]
  %s6 = inlined_call_operand.vmem [shape: f32[1,324], index: 6, kind: input, shape index: {}]
  %s7 = inlined_call_operand.hbm [shape: f32[2,32,324], index: 7, kind: output, shape index: {}]
  %s8 = sld [smem:[#allocation0]]
  $region65: #{tpu_custom_call.1} parent=0
    _
  %s10 = ssub.s32 1, %s8
  %s11 = scalar_select 0, %s10, %s8
  $region1: #{tpu_custom_call.1} parent=0
    #allocation4 [shape = 'u8[16384]{0}', space=vmem, size = 0x4000, scoped, tag = 'input window, operand 1, single buffered']
    #allocation5 [shape = 's32[2]{0}', space=sflag, size = 0x8, scoped, tag = 'scoped memory for tpu_custom_call.1']
    #allocation6 [shape = 's32[2]{0}', space=sflag, size = 0x8, scoped, tag = 'scoped memory for tpu_custom_call.1']
    #allocation7 [shape = 'u8[98304]{0}', space=vmem, size = 0x18000, scoped, tag = 'output window, operand 0']
    %12 = vsyncpa [#allocation5], 0
    %13 = vsyncpa [#allocation6], 0
    %s14 = scalar_lea.sflag [#allocation6], 1
    %15 = vsyncpa %s14, 0
    loop: start=0, step=1, limit=4
    $region2: #{tpu_custom_call.1} parent=1 // loop_pre_header
      _
    $region3: #{tpu_custom_call.1} parent=1 // loop_header
      %s17 = sphi 0, %s21
      %p18 = scmp.ge.s32.totalorder %s17, 4
      %s27 = sphi 0, %s29
      %s30 = sphi 0, %s27
      %s31 = sphi 0, %s30
      %s47 = sphi 0, %s31
      %s51 = sphi 0, %s51
      %s53 = sphi 0, %s51
      %s54 = sphi 0, %s53
      %s68 = sphi 0, %s54
      %s72 = sphi 0, %s72
      %s74 = sphi 0, %s72
      %s75 = sphi 0, %s74
      %s89 = sphi 0, %s75
      %s93 = sphi 0, %s93
      %s95 = sphi 0, %s93
      %s96 = sphi 0, %s95
      %s110 = sphi 0, %s96
      %s114 = sphi 0, %s114
      %s116 = sphi 0, %s114
      %s117 = sphi 0, %s116
      %s131 = sphi 0, %s117
      %s135 = sphi 0, %s135
      %s137 = sphi 0, %s135
      %s138 = sphi 0, %s137
      %s152 = sphi 0, %s138
      %s156 = sphi 0, %s156
      %s158 = sphi 0, %s156
      %s159 = sphi 0, %s158
      %s173 = sphi 0, %s159
      %s179 = sphi 0, %s181
      %s182 = sphi 0, %s179
      %s183 = sphi 0, %s182
      %s199 = sphi 0, %s183
    $region4: #{tpu_custom_call.1} parent=1 // loop_header_branch
      %20 = sbr.rel (%p18) target = $region8
    $region5: #{tpu_custom_call.1} parent=1 // loop_body
      %s22 = ssub.s32 %s17, 1
      %s23 = ssub.s32 %s17, 2
      %s24 = sadd.s32 %s17, 1
      %s25 = ssub.s32 %s17, %s24
      %p26 = scmp.eq.s32.totalorder %s25, 0
      %s28 = sadd.s32 %s27, 1
      %s29 = scalar_select %p26, %s27, %s28
      %p32 = pneg %p26
      %p33 = scmp.eq.s32.totalorder %s17, 1
      %p34 = por %p32, %p33
      %p35 = scmp.ne.s32.totalorder %s27, %s30
      %p36 = scmp.eq.s32.totalorder %s17, 0
      %p37 = por %p35, %p36
      %p38 = scmp.ne.s32.totalorder %s27, %s30
      %p39 = scmp.eq.s32.totalorder %s22, 1
      %p40 = por %p38, %p39
      %p41 = scmp.ne.s32.totalorder %s30, %s31
      %p42 = scmp.eq.s32.totalorder %s22, 0
      %p43 = por %p41, %p42
      %p44 = scmp.ne.s32.totalorder %s30, %s31
      %p45 = scmp.eq.s32.totalorder %s23, 1
      %p46 = por %p44, %p45
      %p48 = scmp.ne.s32.totalorder %s31, %s47
      %p49 = scmp.eq.s32.totalorder %s23, 0
      %p50 = por %p48, %p49
      %s52 = sadd.s32 %s51, 1
      %p55 = scmp.eq.s32.totalorder %s17, 1
      %p56 = scmp.ne.s32.totalorder %s51, %s53
      %p57 = scmp.eq.s32.totalorder %s17, 0
      %p58 = por %p56, %p57
      %p59 = scmp.ne.s32.totalorder %s51, %s53
      %p60 = scmp.eq.s32.totalorder %s22, 1
      %p61 = por %p59, %p60
      %p62 = scmp.ne.s32.totalorder %s53, %s54
      %p63 = scmp.eq.s32.totalorder %s22, 0
      %p64 = por %p62, %p63
      %p65 = scmp.ne.s32.totalorder %s53, %s54
      %p66 = scmp.eq.s32.totalorder %s23, 1
      %p67 = por %p65, %p66
      %p69 = scmp.ne.s32.totalorder %s54, %s68
      %p70 = scmp.eq.s32.totalorder %s23, 0
      %p71 = por %p69, %p70
      %s73 = sadd.s32 %s72, 1
      %p76 = scmp.eq.s32.totalorder %s17, 1
      %p77 = scmp.ne.s32.totalorder %s72, %s74
      %p78 = scmp.eq.s32.totalorder %s17, 0
      %p79 = por %p77, %p78
      %p80 = scmp.ne.s32.totalorder %s72, %s74
      %p81 = scmp.eq.s32.totalorder %s22, 1
      %p82 = por %p80, %p81
      %p83 = scmp.ne.s32.totalorder %s74, %s75
      %p84 = scmp.eq.s32.totalorder %s22, 0
      %p85 = por %p83, %p84
      %p86 = scmp.ne.s32.totalorder %s74, %s75
      %p87 = scmp.eq.s32.totalorder %s23, 1
      %p88 = por %p86, %p87
      %p90 = scmp.ne.s32.totalorder %s75, %s89
      %p91 = scmp.eq.s32.totalorder %s23, 0
      %p92 = por %p90, %p91
      %s94 = sadd.s32 %s93, 1
      %p97 = scmp.eq.s32.totalorder %s17, 1
      %p98 = scmp.ne.s32.totalorder %s93, %s95
      %p99 = scmp.eq.s32.totalorder %s17, 0
      %p100 = por %p98, %p99
      %p101 = scmp.ne.s32.totalorder %s93, %s95
      %p102 = scmp.eq.s32.totalorder %s22, 1
      %p103 = por %p101, %p102
      %p104 = scmp.ne.s32.totalorder %s95, %s96
      %p105 = scmp.eq.s32.totalorder %s22, 0
      %p106 = por %p104, %p105
      %p107 = scmp.ne.s32.totalorder %s95, %s96
      %p108 = scmp.eq.s32.totalorder %s23, 1
      %p109 = por %p107, %p108
      %p111 = scmp.ne.s32.totalorder %s96, %s110
      %p112 = scmp.eq.s32.totalorder %s23, 0
      %p113 = por %p111, %p112
      %s115 = sadd.s32 %s114, 1
      %p118 = scmp.eq.s32.totalorder %s17, 1
      %p119 = scmp.ne.s32.totalorder %s114, %s116
      %p120 = scmp.eq.s32.totalorder %s17, 0
      %p121 = por %p119, %p120
      %p122 = scmp.ne.s32.totalorder %s114, %s116
      %p123 = scmp.eq.s32.totalorder %s22, 1
      %p124 = por %p122, %p123
      %p125 = scmp.ne.s32.totalorder %s116, %s117
      %p126 = scmp.eq.s32.totalorder %s22, 0
      %p127 = por %p125, %p126
      %p128 = scmp.ne.s32.totalorder %s116, %s117
      %p129 = scmp.eq.s32.totalorder %s23, 1
      %p130 = por %p128, %p129
      %p132 = scmp.ne.s32.totalorder %s117, %s131
      %p133 = scmp.eq.s32.totalorder %s23, 0
      %p134 = por %p132, %p133
      %s136 = sadd.s32 %s135, 1
      %p139 = scmp.eq.s32.totalorder %s17, 1
      %p140 = scmp.ne.s32.totalorder %s135, %s137
      %p141 = scmp.eq.s32.totalorder %s17, 0
      %p142 = por %p140, %p141
      %p143 = scmp.ne.s32.totalorder %s135, %s137
      %p144 = scmp.eq.s32.totalorder %s22, 1
      %p145 = por %p143, %p144
      %p146 = scmp.ne.s32.totalorder %s137, %s138
      %p147 = scmp.eq.s32.totalorder %s22, 0
      %p148 = por %p146, %p147
      %p149 = scmp.ne.s32.totalorder %s137, %s138
      %p150 = scmp.eq.s32.totalorder %s23, 1
      %p151 = por %p149, %p150
      %p153 = scmp.ne.s32.totalorder %s138, %s152
      %p154 = scmp.eq.s32.totalorder %s23, 0
      %p155 = por %p153, %p154
      %s157 = sadd.s32 %s156, 1
      %p160 = scmp.eq.s32.totalorder %s17, 1
      %p161 = scmp.ne.s32.totalorder %s156, %s158
      %p162 = scmp.eq.s32.totalorder %s17, 0
      %p163 = por %p161, %p162
      %p164 = scmp.ne.s32.totalorder %s156, %s158
      %p165 = scmp.eq.s32.totalorder %s22, 1
      %p166 = por %p164, %p165
      %p167 = scmp.ne.s32.totalorder %s158, %s159
      %p168 = scmp.eq.s32.totalorder %s22, 0
      %p169 = por %p167, %p168
      %p170 = scmp.ne.s32.totalorder %s158, %s159
      %p171 = scmp.eq.s32.totalorder %s23, 1
      %p172 = por %p170, %p171
      %p174 = scmp.ne.s32.totalorder %s159, %s173
      %p175 = scmp.eq.s32.totalorder %s23, 0
      %p176 = por %p174, %p175
      %s177 = ssub.s32 %s17, %s24
      %p178 = scmp.eq.s32.totalorder %s177, 0
      %s180 = sadd.s32 %s179, 1
      %s181 = scalar_select %p178, %s179, %s180
      %p184 = pneg %p178
      %p185 = scmp.eq.s32.totalorder %s17, 1
      %p186 = por %p184, %p185
      %p187 = scmp.ne.s32.totalorder %s179, %s182
      %p188 = scmp.eq.s32.totalorder %s17, 0
      %p189 = por %p187, %p188
      %p190 = scmp.ne.s32.totalorder %s179, %s182
      %p191 = scmp.eq.s32.totalorder %s22, 1
      %p192 = por %p190, %p191
      %p193 = scmp.ne.s32.totalorder %s182, %s183
      %p194 = scmp.eq.s32.totalorder %s22, 0
      %p195 = por %p193, %p194
      %p196 = scmp.ne.s32.totalorder %s182, %s183
      %p197 = scmp.eq.s32.totalorder %s23, 1
      %p198 = por %p196, %p197
      %p200 = scmp.ne.s32.totalorder %s183, %s199
      %p201 = scmp.eq.s32.totalorder %s23, 0
      %p202 = por %p200, %p201
      %p203 = scmp.le.s32.totalorder 1, %s17
      %p204 = scmp.lt.s32.totalorder %s17, 3
      %p205 = pnand %p203, %p204
      %p206 = pneg %p205
      // Predicated region
      $region9: #{tpu_custom_call.1} parent=5 // pred_check
        _
      $region10: #{tpu_custom_call.1} parent=5 // pred_check_branch
        %208 = sbr.rel (%p205) target = $region12
      $region11: #{tpu_custom_call.1} parent=5 // pred_region
        %s209 = ssub.s32 %s17, 1
        // Predicated region
        $region13: #{tpu_custom_call.1} parent=11 // pred_check
          %p210 = pneg %p64
        $region14: #{tpu_custom_call.1} parent=11 // pred_check_branch
          %212 = sbr.rel (%p210) target = $region16
        $region15: #{tpu_custom_call.1} parent=11 // pred_region
          %s214 = ssub.s32 512, 512
          %215 = vsyncadd [#allocation5], %s214
          %s216 = sshll.u32 [#allocation4], 4
          %s217 = int_to_ptr.vmem [resolvable:$true] %s216
          %222 = dma.hbm_to_vmem [thread:$0]  %s1, 512, %s217, [#allocation5], 128, 128, 8
        $region16: #{tpu_custom_call.1} parent=11 // pred_fallthru
          _
        // Predicated region
        $region17: #{tpu_custom_call.1} parent=11 // pred_check
          %p223 = pneg %p85
        $region18: #{tpu_custom_call.1} parent=11 // pred_check_branch
          %225 = sbr.rel (%p223) target = $region20
        $region19: #{tpu_custom_call.1} parent=11 // pred_region
          _
        $region20: #{tpu_custom_call.1} parent=11 // pred_fallthru
          _
        // Predicated region
        $region21: #{tpu_custom_call.1} parent=11 // pred_check
          %p226 = pneg %p106
        $region22: #{tpu_custom_call.1} parent=11 // pred_check_branch
          %228 = sbr.rel (%p226) target = $region24
        $region23: #{tpu_custom_call.1} parent=11 // pred_region
          _
        $region24: #{tpu_custom_call.1} parent=11 // pred_fallthru
          _
        // Predicated region
        $region25: #{tpu_custom_call.1} parent=11 // pred_check
          %p229 = pneg %p127
        $region26: #{tpu_custom_call.1} parent=11 // pred_check_branch
          %231 = sbr.rel (%p229) target = $region28
        $region27: #{tpu_custom_call.1} parent=11 // pred_region
          _
        $region28: #{tpu_custom_call.1} parent=11 // pred_fallthru
          _
        // Predicated region
        $region29: #{tpu_custom_call.1} parent=11 // pred_check
          %p232 = pneg %p148
        $region30: #{tpu_custom_call.1} parent=11 // pred_check_branch
          %234 = sbr.rel (%p232) target = $region32
        $region31: #{tpu_custom_call.1} parent=11 // pred_region
          _
        $region32: #{tpu_custom_call.1} parent=11 // pred_fallthru
          _
        // Predicated region
        $region33: #{tpu_custom_call.1} parent=11 // pred_check
          %p235 = pneg %p169
        $region34: #{tpu_custom_call.1} parent=11 // pred_check_branch
          %237 = sbr.rel (%p235) target = $region36
        $region35: #{tpu_custom_call.1} parent=11 // pred_region
          _
        $region36: #{tpu_custom_call.1} parent=11 // pred_fallthru
          _
      $region12: #{tpu_custom_call.1} parent=5 // pred_fallthru
        _
      %p238 = scmp.lt.s32.totalorder %s17, 2
      // Predicated region
      $region37: #{tpu_custom_call.1} parent=5 // pred_check
        %p239 = pneg %p238
      $region38: #{tpu_custom_call.1} parent=5 // pred_check_branch
        %241 = sbr.rel (%p239) target = $region40
      $region39: #{tpu_custom_call.1} parent=5 // pred_region
        // Predicated region
        $region41: #{tpu_custom_call.1} parent=39 // pred_check
          %p242 = pneg %p37
        $region42: #{tpu_custom_call.1} parent=39 // pred_check_branch
          %244 = sbr.rel (%p242) target = $region44
        $region43: #{tpu_custom_call.1} parent=39 // pred_region
          %p245 = scmp.lt.s32.totalorder %s17, 1
          %s246 = scalar_select %p245, %s17, 1
          %s247 = smul.addr %s246, 6
          %s248 = smul.addr %s247, 4
          %s249 = scalar_lea.vmem %s0, %s248
        $region44: #{tpu_custom_call.1} parent=39 // pred_fallthru
          _
      $region40: #{tpu_custom_call.1} parent=5 // pred_fallthru
        _
      %p250 = scmp.le.s32.totalorder 1, %s17
      %p251 = scmp.lt.s32.totalorder %s17, 3
      %p252 = pnand %p250, %p251
      %p253 = pneg %p252
      // Predicated region
      $region45: #{tpu_custom_call.1} parent=5 // pred_check
        _
      $region46: #{tpu_custom_call.1} parent=5 // pred_check_branch
        %255 = sbr.rel (%p252) target = $region48
      $region47: #{tpu_custom_call.1} parent=5 // pred_region
        %s256 = ssub.s32 %s17, 1
        // Predicated region
        $region49: #{tpu_custom_call.1} parent=47 // pred_check
          %p257 = pneg %p64
        $region50: #{tpu_custom_call.1} parent=47 // pred_check_branch
          %259 = sbr.rel (%p257) target = $region52
        $region51: #{tpu_custom_call.1} parent=47 // pred_region
          %260 = dma.done [#allocation5], 512
        $region52: #{tpu_custom_call.1} parent=47 // pred_fallthru
          _
        %p261 = scmp.lt.s32.totalorder %s22, 1
        %s262 = scalar_select %p261, %s22, 1
        %s263 = smul.addr %s262, 6
        %s264 = smul.addr %s263, 4
        %s265 = scalar_lea.vmem %s0, %s264
        %p266 = pneg %p43
        %p267 = pneg %p40
        %p268 = pneg %p64
        %p269 = pneg %p61
        %p270 = pneg %p85
        %p271 = pneg %p82
        %p272 = pneg %p106
        %p273 = pneg %p103
        %p274 = pneg %p127
        %p275 = pneg %p124
        %p276 = pneg %p148
        %p277 = pneg %p145
        %p278 = pneg %p169
        %p279 = pneg %p166
        %p280 = pneg %p195
        %p281 = pneg %p192
        %s282 = sand.u32 %s182, 1
        %s283 = scalar_lea.sflag [#allocation6], %s282
        %s284 = sand.u32 %s182, 1
        %s285 = smul.addr %s284, 96
        %s286 = scalar_lea.vmem [#allocation7], %s285
        %p287 = scmp.lt.s32.totalorder %s22, 1
        %s288 = scalar_select %p287, %s22, 1
        %s289 = smul.addr %s288, 6
        %s290 = smul.addr %s289, 4
        %s291 = scalar_lea.vmem %s0, %s290
        %v293 = vld [vmem:[%s291] sm:$0xff]
        %v294 = vld [vmem:[%s291 + $0x8] sm:$0xf]
        %v295 = vld [vmem:[%s291 + $0xc] sm:$0xff]
        %v296 = vld [vmem:[%s291 + $0x14] sm:$0xf]
        %v301 = vunpack.c.l.b16 %v293
        %v302 = vunpack.c.h.b16 %v293
        %v303 = vunpack.c.l.b16 %v294
        %v304 = vunpack.c.l.b16 %v295
        %v305 = vunpack.c.h.b16 %v295
        %v306 = vunpack.c.l.b16 %v296
        %v307 = vpack.c.b16 %v304, %v301
        %v308 = vpack.c.b16 %v305, %v302
        %v309 = vpack.c.b16 %v306, %v303
        %313 = vst [vmem:[#allocation2] sm:$0xff] %v307
        %314 = vst [vmem:[#allocation2 + $0x8] sm:$0xff] %v308
        %vm315 = vcmask 556032
        %316 = vst.msk [vmem:[#allocation2 + $0x10] sm:$0xff] %vm315, %v309
        %v317 = vld [vmem:[%s291] sm:$0xff]
        %v318 = vld [vmem:[%s291 + $0x8] sm:$0xf]
        %v319 = vld [vmem:[%s291 + $0xc] sm:$0xff]
        %v320 = vld [vmem:[%s291 + $0x14] sm:$0xf]
        %v325 = vunpack.c.l.b16 %v317
        %v326 = vunpack.c.h.b16 %v317
        %v327 = vunpack.c.l.b16 %v318
        %v328 = vunpack.c.l.b16 %v319
        %v329 = vunpack.c.h.b16 %v319
        %v330 = vunpack.c.l.b16 %v320
        %v331 = vpack.c.b16 %v328, %v325
        %v332 = vpack.c.b16 %v329, %v326
        %v333 = vpack.c.b16 %v330, %v327
        %334 = vrot.lane.b32.xlu0 %v331, 127
        %v335 = vpop.permute.xlu0 %334
        %336 = vrot.lane.b32.xlu0 %v332, 127
        %v337 = vpop.permute.xlu0 %336
        %338 = vrot.lane.b32.xlu0 %v333, 127
        %v339 = vpop.permute.xlu0 %338
        %vm340 = vcmask 1039360
        %v341 = vsel %vm340, %v335, %v337
        %v342 = vsel %vm340, %v337, %v339
        %346 = vst [vmem:[#allocation2 + $0x18] sm:$0xff] %v341
        %347 = vst [vmem:[#allocation2 + $0x20] sm:$0xff] %v342
        %348 = vst.msk [vmem:[#allocation2 + $0x28] sm:$0xff] %vm315, %v339
        %v349 = vld [vmem:[%s291] sm:$0xff]
        %v350 = vld [vmem:[%s291 + $0x8] sm:$0xf]
        %v351 = vld [vmem:[%s291 + $0xc] sm:$0xff]
        %v352 = vld [vmem:[%s291 + $0x14] sm:$0xf]
        %v357 = vunpack.c.l.b16 %v349
        %v358 = vunpack.c.h.b16 %v349
        %v359 = vunpack.c.l.b16 %v350
        %v360 = vunpack.c.l.b16 %v351
        %v361 = vunpack.c.h.b16 %v351
        %v362 = vunpack.c.l.b16 %v352
        %v363 = vpack.c.b16 %v360, %v357
        %v364 = vpack.c.b16 %v361, %v358
        %v365 = vpack.c.b16 %v362, %v359
        %366 = vrot.lane.b32.xlu0 %v363, 126
        %v367 = vpop.permute.xlu0 %366
        %368 = vrot.lane.b32.xlu0 %v364, 126
        %v369 = vpop.permute.xlu0 %368
        %370 = vrot.lane.b32.xlu0 %v365, 126
        %v371 = vpop.permute.xlu0 %370
        %vm372 = vcmask 1031168
        %v373 = vsel %vm372, %v367, %v369
        %v374 = vsel %vm372, %v369, %v371
        %378 = vst [vmem:[#allocation2 + $0x30] sm:$0xff] %v373
        %379 = vst [vmem:[#allocation2 + $0x38] sm:$0xff] %v374
        %380 = vst.msk [vmem:[#allocation2 + $0x40] sm:$0xff] %vm315, %v371
        %v381 = vld [vmem:[%s291] sm:$0xff]
        %v382 = vld [vmem:[%s291 + $0x8] sm:$0xf]
        %v383 = vld [vmem:[%s291 + $0xc] sm:$0xff]
        %v384 = vld [vmem:[%s291 + $0x14] sm:$0xf]
        %v389 = vunpack.c.l.b16 %v381
        %v390 = vunpack.c.h.b16 %v381
        %v391 = vunpack.c.l.b16 %v382
        %v392 = vunpack.c.l.b16 %v383
        %v393 = vunpack.c.h.b16 %v383
        %v394 = vunpack.c.l.b16 %v384
        %v395 = vpack.c.b16 %v392, %v389
        %v396 = vpack.c.b16 %v393, %v390
        %v397 = vpack.c.b16 %v394, %v391
        %398 = vrot.lane.b32.xlu0 %v395, 110
        %v399 = vpop.permute.xlu0 %398
        %400 = vrot.lane.b32.xlu0 %v396, 110
        %v401 = vpop.permute.xlu0 %400
        %402 = vrot.lane.b32.xlu0 %v397, 110
        %v403 = vpop.permute.xlu0 %402
        %vm404 = vcmask 900096
        %v405 = vsel %vm404, %v399, %v401
        %v406 = vsel %vm404, %v401, %v403
        %410 = vst [vmem:[#allocation2 + $0x48] sm:$0xff] %v405
        %411 = vst [vmem:[#allocation2 + $0x50] sm:$0xff] %v406
        %412 = vst.msk [vmem:[#allocation2 + $0x58] sm:$0xff] %vm315, %v403
        %v413 = vld [vmem:[%s291] sm:$0xff]
        %v414 = vld [vmem:[%s291 + $0x8] sm:$0xf]
        %v415 = vld [vmem:[%s291 + $0xc] sm:$0xff]
        %v416 = vld [vmem:[%s291 + $0x14] sm:$0xf]
        %v421 = vunpack.c.l.b16 %v413
        %v422 = vunpack.c.h.b16 %v413
        %v423 = vunpack.c.l.b16 %v414
        %v424 = vunpack.c.l.b16 %v415
        %v425 = vunpack.c.h.b16 %v415
        %v426 = vunpack.c.l.b16 %v416
        %v427 = vpack.c.b16 %v424, %v421
        %v428 = vpack.c.b16 %v425, %v422
        %v429 = vpack.c.b16 %v426, %v423
        %430 = vrot.lane.b32.xlu0 %v427, 109
        %v431 = vpop.permute.xlu0 %430
        %432 = vrot.lane.b32.xlu0 %v428, 109
        %v433 = vpop.permute.xlu0 %432
        %434 = vrot.lane.b32.xlu0 %v429, 109
        %v435 = vpop.permute.xlu0 %434
        %vm436 = vcmask 891904
        %v437 = vsel %vm436, %v431, %v433
        %v438 = vsel %vm436, %v433, %v435
        %442 = vst [vmem:[#allocation2 + $0x60] sm:$0xff] %v437
        %443 = vst [vmem:[#allocation2 + $0x68] sm:$0xff] %v438
        %444 = vst.msk [vmem:[#allocation2 + $0x70] sm:$0xff] %vm315, %v435
        %v445 = vld [vmem:[%s291] sm:$0xff]
        %v446 = vld [vmem:[%s291 + $0x8] sm:$0xf]
        %v447 = vld [vmem:[%s291 + $0xc] sm:$0xff]
        %v448 = vld [vmem:[%s291 + $0x14] sm:$0xf]
        %v453 = vunpack.c.l.b16 %v445
        %v454 = vunpack.c.h.b16 %v445
        %v455 = vunpack.c.l.b16 %v446
        %v456 = vunpack.c.l.b16 %v447
        %v457 = vunpack.c.h.b16 %v447
        %v458 = vunpack.c.l.b16 %v448
        %v459 = vpack.c.b16 %v456, %v453
        %v460 = vpack.c.b16 %v457, %v454
        %v461 = vpack.c.b16 %v458, %v455
        %462 = vrot.lane.b32.xlu0 %v459, 108
        %v463 = vpop.permute.xlu0 %462
        %464 = vrot.lane.b32.xlu0 %v460, 108
        %v465 = vpop.permute.xlu0 %464
        %466 = vrot.lane.b32.xlu0 %v461, 108
        %v467 = vpop.permute.xlu0 %466
        %vm468 = vcmask 883712
        %v469 = vsel %vm468, %v463, %v465
        %v470 = vsel %vm468, %v465, %v467
        %474 = vst [vmem:[#allocation2 + $0x78] sm:$0xff] %v469
        %475 = vst [vmem:[#allocation2 + $0x80] sm:$0xff] %v470
        %476 = vst.msk [vmem:[#allocation2 + $0x88] sm:$0xff] %vm315, %v467
        %v477 = vld [vmem:[%s291] sm:$0xff]
        %v478 = vld [vmem:[%s291 + $0x8] sm:$0xf]
        %v479 = vld [vmem:[%s291 + $0xc] sm:$0xff]
        %v480 = vld [vmem:[%s291 + $0x14] sm:$0xf]
        %v485 = vunpack.c.l.b16 %v477
        %v486 = vunpack.c.h.b16 %v477
        %v487 = vunpack.c.l.b16 %v478
        %v488 = vunpack.c.l.b16 %v479
        %v489 = vunpack.c.h.b16 %v479
        %v490 = vunpack.c.l.b16 %v480
        %v491 = vpack.c.b16 %v488, %v485
        %v492 = vpack.c.b16 %v489, %v486
        %v493 = vpack.c.b16 %v490, %v487
        %494 = vrot.lane.b32.xlu0 %v491, 92
        %v495 = vpop.permute.xlu0 %494
        %496 = vrot.lane.b32.xlu0 %v492, 92
        %v497 = vpop.permute.xlu0 %496
        %498 = vrot.lane.b32.xlu0 %v493, 92
        %v499 = vpop.permute.xlu0 %498
        %vm500 = vcmask 752640
        %v501 = vsel %vm500, %v495, %v497
        %v502 = vsel %vm500, %v497, %v499
        %506 = vst [vmem:[#allocation2 + $0x90] sm:$0xff] %v501
        %507 = vst [vmem:[#allocation2 + $0x98] sm:$0xff] %v502
        %508 = vst.msk [vmem:[#allocation2 + $0xa0] sm:$0xff] %vm315, %v499
        %v509 = vld [vmem:[%s291] sm:$0xff]
        %v510 = vld [vmem:[%s291 + $0x8] sm:$0xf]
        %v511 = vld [vmem:[%s291 + $0xc] sm:$0xff]
        %v512 = vld [vmem:[%s291 + $0x14] sm:$0xf]
        %v517 = vunpack.c.l.b16 %v509
        %v518 = vunpack.c.h.b16 %v509
        %v519 = vunpack.c.l.b16 %v510
        %v520 = vunpack.c.l.b16 %v511
        %v521 = vunpack.c.h.b16 %v511
        %v522 = vunpack.c.l.b16 %v512
        %v523 = vpack.c.b16 %v520, %v517
        %v524 = vpack.c.b16 %v521, %v518
        %v525 = vpack.c.b16 %v522, %v519
        %526 = vrot.lane.b32.xlu0 %v523, 91
        %v527 = vpop.permute.xlu0 %526
        %528 = vrot.lane.b32.xlu0 %v524, 91
        %v529 = vpop.permute.xlu0 %528
        %530 = vrot.lane.b32.xlu0 %v525, 91
        %v531 = vpop.permute.xlu0 %530
        %vm532 = vcmask 744448
        %v533 = vsel %vm532, %v527, %v529
        %v534 = vsel %vm532, %v529, %v531
        %538 = vst [vmem:[#allocation2 + $0xa8] sm:$0xff] %v533
        %539 = vst [vmem:[#allocation2 + $0xb0] sm:$0xff] %v534
        %540 = vst.msk [vmem:[#allocation2 + $0xb8] sm:$0xff] %vm315, %v531
        %v541 = vld [vmem:[%s291] sm:$0xff]
        %v542 = vld [vmem:[%s291 + $0x8] sm:$0xf]
        %v543 = vld [vmem:[%s291 + $0xc] sm:$0xff]
        %v544 = vld [vmem:[%s291 + $0x14] sm:$0xf]
        %v549 = vunpack.c.l.b16 %v541
        %v550 = vunpack.c.h.b16 %v541
        %v551 = vunpack.c.l.b16 %v542
        %v552 = vunpack.c.l.b16 %v543
        %v553 = vunpack.c.h.b16 %v543
        %v554 = vunpack.c.l.b16 %v544
        %v555 = vpack.c.b16 %v552, %v549
        %v556 = vpack.c.b16 %v553, %v550
        %v557 = vpack.c.b16 %v554, %v551
        %558 = vrot.lane.b32.xlu0 %v555, 90
        %v559 = vpop.permute.xlu0 %558
        %560 = vrot.lane.b32.xlu0 %v556, 90
        %v561 = vpop.permute.xlu0 %560
        %562 = vrot.lane.b32.xlu0 %v557, 90
        %v563 = vpop.permute.xlu0 %562
        %vm564 = vcmask 736256
        %v565 = vsel %vm564, %v559, %v561
        %v566 = vsel %vm564, %v561, %v563
        %570 = vst [vmem:[#allocation2 + $0xc0] sm:$0xff] %v565
        %571 = vst [vmem:[#allocation2 + $0xc8] sm:$0xff] %v566
        %572 = vst.msk [vmem:[#allocation2 + $0xd0] sm:$0xff] %vm315, %v563
        %v573 = vld [vmem:[#allocation4] sm:$0xff]
        %v574 = vld [vmem:[#allocation4 + $0x8] sm:$0xff]
        %v575 = vld [vmem:[#allocation4 + $0x10] sm:$0xff]
        %v576 = vld [vmem:[#allocation4 + $0x18] sm:$0xff]
        %v577 = vld [vmem:[#allocation2] sm:$0xff]
        %v578 = vld [vmem:[#allocation2 + $0x8] sm:$0xff]
        %v579 = vld [vmem:[#allocation2 + $0x10] sm:$0xff]
        %v580 = vld [vmem:[#allocation2 + $0x18] sm:$0xff]
        %v581 = vld [vmem:[#allocation2 + $0x20] sm:$0xff]
        %v582 = vld [vmem:[#allocation2 + $0x28] sm:$0xff]
        %v583 = vld [vmem:[#allocation2 + $0x30] sm:$0xff]
        %v584 = vld [vmem:[#allocation2 + $0x38] sm:$0xff]
        %v585 = vld [vmem:[#allocation2 + $0x40] sm:$0xff]
        %v586 = vld [vmem:[#allocation2 + $0x48] sm:$0xff]
        %v587 = vld [vmem:[#allocation2 + $0x50] sm:$0xff]
        %v588 = vld [vmem:[#allocation2 + $0x58] sm:$0xff]
        %v589 = vld [vmem:[#allocation2 + $0x60] sm:$0xff]
        %v590 = vld [vmem:[#allocation2 + $0x68] sm:$0xff]
        %v591 = vld [vmem:[#allocation2 + $0x70] sm:$0xff]
        %v592 = vld [vmem:[#allocation2 + $0x78] sm:$0xff]
        %v593 = vld [vmem:[#allocation2 + $0x80] sm:$0xff]
        %v594 = vld [vmem:[#allocation2 + $0x88] sm:$0xff]
        %v595 = vld [vmem:[#allocation2 + $0x90] sm:$0xff]
        %v596 = vld [vmem:[#allocation2 + $0x98] sm:$0xff]
        %v597 = vld [vmem:[#allocation2 + $0xa0] sm:$0xff]
        %v598 = vld [vmem:[#allocation2 + $0xa8] sm:$0xff]
        %v599 = vld [vmem:[#allocation2 + $0xb0] sm:$0xff]
        %v600 = vld [vmem:[#allocation2 + $0xb8] sm:$0xff]
        %v601 = vld [vmem:[#allocation2 + $0xc0] sm:$0xff]
        %v602 = vld [vmem:[#allocation2 + $0xc8] sm:$0xff]
        %v603 = vld [vmem:[#allocation2 + $0xd0] sm:$0xff]
        %v604 = vld [vmem:[%s2] sm:$0xff]
        %v605 = vld [vmem:[%s2 + $0x8] sm:$0xff]
        %v606 = vld [vmem:[%s2 + $0x10] sm:$0xff]
        %v607 = vld [vmem:[%s2 + $0x18] sm:$0xff]
        %609 = vset.pattern.permute.xlu0 0
        %610 = vperm.xlu0 %609, %v604
        %v611 = vpop.permute.xlu0 %610
        %614 = vset.pattern.permute.xlu0 0
        %615 = vperm.xlu0 %614, %v605
        %v616 = vpop.permute.xlu0 %615
        %619 = vset.pattern.permute.xlu0 0
        %620 = vperm.xlu0 %619, %v606
        %v621 = vpop.permute.xlu0 %620
        %624 = vset.pattern.permute.xlu0 0
        %625 = vperm.xlu0 %624, %v607
        %v626 = vpop.permute.xlu0 %625
        %v632 = vunpack.c.l.b16 %v573
        %v633 = vunpack.c.h.b16 %v573
        %v634 = vunpack.c.l.b16 %v574
        %v635 = vunpack.c.h.b16 %v574
        %v636 = vunpack.c.l.b16 %v575
        %v637 = vunpack.c.h.b16 %v575
        %v638 = vunpack.c.l.b16 %v576
        %v639 = vunpack.c.h.b16 %v576
        %v640 = vpack.c.b16 %v634, %v632
        %v641 = vpack.c.b16 %v635, %v633
        %v642 = vpack.c.b16 %v638, %v636
        %v643 = vpack.c.b16 %v639, %v637
        %vm646 = vcmask 130048
        %v648 = vsel %vm646, %v641, 0
        %v651 = vsel %vm646, %v643, 0
        %653 = vmatprep.subr.bf16.mxu0 %v578
        %654 = vmatpush1.bf16.msra.mxu0 %v577
        %655 = vmatprep.subr.bf16.mxu0 %v581
        %656 = vmatpush1.bf16.msra.mxu0 %v580
        %657 = vmatprep.subr.bf16.mxu0 %v584
        %658 = vmatpush1.bf16.msra.mxu0 %v583
        %659 = vmatprep.subr.bf16.mxu0 %v587
        %660 = vmatpush1.bf16.msra.mxu0 %v586
        %661 = vmatprep.subr.bf16.mxu0 %v590
        %662 = vmatpush1.bf16.msra.mxu0 %v589
        %663 = vmatprep.subr.bf16.mxu0 %v593
        %664 = vmatpush1.bf16.msra.mxu0 %v592
        %665 = vmatprep.subr.bf16.mxu0 %v596
        %666 = vmatpush1.bf16.msra.mxu0 %v595
        %667 = vmatprep.subr.bf16.mxu0 %v599
        %668 = vmatpush1.bf16.msra.mxu0 %v598
        %669 = vmatprep.subr.bf16.mxu0 %v602
        %670 = vmatpush1.bf16.msra.mxu0 %v601
        %671 = vmatprep.subr.bf16.mxu0 0
        %672 = vmatpush1.bf16.msra.mxu0 0
        %673 = vmatprep.subr.bf16.mxu0 0
        %674 = vmatpush1.bf16.msra.mxu0 0
        %675 = vmatprep.subr.bf16.mxu0 0
        %676 = vmatpush1.bf16.msra.mxu0 0
        %677 = vmatprep.subr.bf16.mxu0 0
        %678 = vmatpush1.bf16.msra.mxu0 0
        %679 = vmatprep.subr.bf16.mxu0 0
        %680 = vmatpush1.bf16.msra.mxu0 0
        %681 = vmatprep.subr.bf16.mxu0 0
        %682 = vmatpush1.bf16.msra.mxu0 0
        %683 = vmatprep.subr.bf16.mxu0 0
        %684 = vmatpush1.bf16.msra.mxu0 0
        %685 = vmatprep.mubr.bf16.mxu0 %v648
        %686 = vmatmul.mubr.bf16.gmra.mrb[0].mxu0 %v640
        %v687 = vpop.f32.mrb[0].mxu0
        %v688 = vadd.f32 %v611, %v687
        %v689 = vpop.f32.mrb[0].mxu0
        %v690 = vadd.f32 %v611, %v689
        %v691 = vpop.f32.mrb[0].mxu0
        %v692 = vadd.f32 %v616, %v691
        %v693 = vpop.f32.mrb[0].mxu0
        %v694 = vadd.f32 %v616, %v693
        %695 = vmatprep.mubr.bf16.mxu0 %v651
        %696 = vmatmul.mubr.bf16.gmra.mrb[0].mxu0 %v642
        %v697 = vpop.f32.mrb[0].mxu0
        %v698 = vadd.f32 %v621, %v697
        %v699 = vpop.f32.mrb[0].mxu0
        %v700 = vadd.f32 %v621, %v699
        %v701 = vpop.f32.mrb[0].mxu0
        %v702 = vadd.f32 %v626, %v701
        %v703 = vpop.f32.mrb[0].mxu0
        %v704 = vadd.f32 %v626, %v703
        %705 = vdwg.mxu0
        %706 = vmatprep.subr.bf16.mxu0 0
        %707 = vmatpush1.bf16.msra.mxu0 %v579
        %708 = vmatprep.subr.bf16.mxu0 0
        %709 = vmatpush1.bf16.msra.mxu0 %v582
        %710 = vmatprep.subr.bf16.mxu0 0
        %711 = vmatpush1.bf16.msra.mxu0 %v585
        %712 = vmatprep.subr.bf16.mxu0 0
        %713 = vmatpush1.bf16.msra.mxu0 %v588
        %714 = vmatprep.subr.bf16.mxu0 0
        %715 = vmatpush1.bf16.msra.mxu0 %v591
        %716 = vmatprep.subr.bf16.mxu0 0
        %717 = vmatpush1.bf16.msra.mxu0 %v594
        %718 = vmatprep.subr.bf16.mxu0 0
        %719 = vmatpush1.bf16.msra.mxu0 %v597
        %720 = vmatprep.subr.bf16.mxu0 0
        %721 = vmatpush1.bf16.msra.mxu0 %v600
        %722 = vmatprep.subr.bf16.mxu0 0
        %723 = vmatpush1.bf16.msra.mxu0 %v603
        %724 = vmatprep.subr.bf16.mxu0 0
        %725 = vmatpush1.bf16.msra.mxu0 0
        %726 = vmatprep.subr.bf16.mxu0 0
        %727 = vmatpush1.bf16.msra.mxu0 0
        %728 = vmatprep.subr.bf16.mxu0 0
        %729 = vmatpush1.bf16.msra.mxu0 0
        %730 = vmatprep.subr.bf16.mxu0 0
        %731 = vmatpush1.bf16.msra.mxu0 0
        %732 = vmatprep.subr.bf16.mxu0 0
        %733 = vmatpush1.bf16.msra.mxu0 0
        %734 = vmatprep.subr.bf16.mxu0 0
        %735 = vmatpush1.bf16.msra.mxu0 0
        %736 = vmatprep.subr.bf16.mxu0 0
        %737 = vmatpush1.bf16.msra.mxu0 0
        %738 = vmatprep.mubr.bf16.mxu0 %v648
        %739 = vmatmul.mubr.bf16.gmra.mrb[0].mxu0 %v640
        %v740 = vpop.f32.mrb[0].mxu0
        %v741 = vadd.f32 %v611, %v740
        %v742 = vpop.f32.mrb[0].mxu0
        %v743 = vpop.f32.mrb[0].mxu0
        %v744 = vadd.f32 %v616, %v743
        %v745 = vpop.f32.mrb[0].mxu0
        %746 = vmatprep.mubr.bf16.mxu0 %v651
        %747 = vmatmul.mubr.bf16.gmra.mrb[0].mxu0 %v642
        %v748 = vpop.f32.mrb[0].mxu0
        %v749 = vadd.f32 %v621, %v748
        %v750 = vpop.f32.mrb[0].mxu0
        %v751 = vpop.f32.mrb[0].mxu0
        %v752 = vadd.f32 %v626, %v751
        %v753 = vpop.f32.mrb[0].mxu0
        %754 = vdwg.mxu0
        %v755 = vld [vmem:[%s3] sm:$0xff]
        %v756 = vld [vmem:[%s3 + $0x8] sm:$0xff]
        %v757 = vld [vmem:[%s3 + $0x10] sm:$0xff]
        %v758 = vld [vmem:[%s3 + $0x18] sm:$0xff]
        %760 = vset.pattern.permute.xlu0 0
        %761 = vperm.xlu0 %760, %v755
        %v762 = vpop.permute.xlu0 %761
        %765 = vset.pattern.permute.xlu0 0
        %766 = vperm.xlu0 %765, %v756
        %v767 = vpop.permute.xlu0 %766
        %770 = vset.pattern.permute.xlu0 0
        %771 = vperm.xlu0 %770, %v757
        %v772 = vpop.permute.xlu0 %771
        %775 = vset.pattern.permute.xlu0 0
        %776 = vperm.xlu0 %775, %v758
        %v777 = vpop.permute.xlu0 %776
        %v779 = vmul.f32 %v688, %v762
        %v780 = vmul.f32 %v690, %v762
        %v781 = vmul.f32 %v741, %v762
        %v782 = vmul.f32 %v692, %v767
        %v783 = vmul.f32 %v694, %v767
        %v784 = vmul.f32 %v744, %v767
        %v785 = vmul.f32 %v698, %v772
        %v786 = vmul.f32 %v700, %v772
        %v787 = vmul.f32 %v749, %v772
        %v788 = vmul.f32 %v702, %v777
        %v789 = vmul.f32 %v704, %v777
        %v790 = vmul.f32 %v752, %v777
        %v791 = vmul.f32 %v779, %v779
        %v792 = vmul.f32 %v780, %v780
        %v793 = vmul.f32 %v781, %v781
        %v794 = vmul.f32 %v782, %v782
        %v795 = vmul.f32 %v783, %v783
        %v796 = vmul.f32 %v784, %v784
        %v797 = vmul.f32 %v785, %v785
        %v798 = vmul.f32 %v786, %v786
        %v799 = vmul.f32 %v787, %v787
        %v800 = vmul.f32 %v788, %v788
        %v801 = vmul.f32 %v789, %v789
        %v802 = vmul.f32 %v790, %v790
        %v803 = vsub.f32 0.0, %v791
        %v804 = vsub.f32 0.0, %v792
        %v805 = vsub.f32 0.0, %v793
        %v806 = vsub.f32 0.0, %v794
        %v807 = vsub.f32 0.0, %v795
        %v808 = vsub.f32 0.0, %v796
        %v809 = vsub.f32 0.0, %v797
        %v810 = vsub.f32 0.0, %v798
        %v811 = vsub.f32 0.0, %v799
        %v812 = vsub.f32 0.0, %v800
        %v813 = vsub.f32 0.0, %v801
        %v814 = vsub.f32 0.0, %v802
        %v815 = vmul.f32 %v803, 1.442695
        %v816 = vpow.pop %v815
        %v817 = vmul.f32 %v804, 1.442695
        %v818 = vpow.pop %v817
        %v819 = vmul.f32 %v805, 1.442695
        %v820 = vpow.pop %v819
        %v821 = vmul.f32 %v806, 1.442695
        %v822 = vpow.pop %v821
        %v823 = vmul.f32 %v807, 1.442695
        %v824 = vpow.pop %v823
        %v825 = vmul.f32 %v808, 1.442695
        %v826 = vpow.pop %v825
        %v827 = vmul.f32 %v809, 1.442695
        %v828 = vpow.pop %v827
        %v829 = vmul.f32 %v810, 1.442695
        %v830 = vpow.pop %v829
        %v831 = vmul.f32 %v811, 1.442695
        %v832 = vpow.pop %v831
        %v833 = vmul.f32 %v812, 1.442695
        %v834 = vpow.pop %v833
        %v835 = vmul.f32 %v813, 1.442695
        %v836 = vpow.pop %v835
        %v837 = vmul.f32 %v814, 1.442695
        %v838 = vpow.pop %v837
        %v839 = vld [vmem:[%s5] sm:$0x7]
        %v841 = vlaneseq
        %v842 = vshrl.u32 %v841, 7
        %v843 = vsub.s32 0, %v842
        %v844 = vrot.slane %v839, %v843
        %v845 = vlaneseq
        %v846 = vshrl.u32 %v845, 7
        %v847 = vsub.s32 1, %v846
        %v848 = vrot.slane %v839, %v847
        %v849 = vlaneseq
        %v850 = vshrl.u32 %v849, 7
        %v851 = vsub.s32 2, %v850
        %v852 = vrot.slane %v839, %v851
        %v856 = vmul.f32 %v816, %v844
        %v857 = vmul.f32 %v818, %v848
        %v858 = vmul.f32 %v820, %v852
        %v859 = vmul.f32 %v822, %v844
        %v860 = vmul.f32 %v824, %v848
        %v861 = vmul.f32 %v826, %v852
        %v862 = vmul.f32 %v828, %v844
        %v863 = vmul.f32 %v830, %v848
        %v864 = vmul.f32 %v832, %v852
        %v865 = vmul.f32 %v834, %v844
        %v866 = vmul.f32 %v836, %v848
        %v867 = vmul.f32 %v838, %v852
        %v868 = vld [vmem:[%s4] sm:$0xff]
        %v869 = vld [vmem:[%s4 + $0x8] sm:$0xff]
        %v870 = vld [vmem:[%s4 + $0x10] sm:$0xff]
        %v871 = vld [vmem:[%s4 + $0x18] sm:$0xff]
        %vm872 = vcmask 261120
        %v874 = vsel %vm872, %v868, 0
        %v877 = vsel %vm872, %v869, 0
        %v880 = vsel %vm872, %v870, 0
        %v883 = vsel %vm872, %v871, 0
        %885 = vmatprep.subr.mxu0 %v857
        %886 = vmatpush1.msra.mxu0 %v856
        %887 = vmatprep.subr.mxu0 %v860
        %888 = vmatpush1.msra.mxu0 %v859
        %889 = vmatprep.subr.mxu0 %v863
        %890 = vmatpush1.msra.mxu0 %v862
        %891 = vmatprep.subr.mxu0 %v866
        %892 = vmatpush1.msra.mxu0 %v865
        %893 = vmatprep.subr.mxu0 0.0
        %894 = vmatpush1.msra.mxu0 0.0
        %895 = vmatprep.subr.mxu0 0.0
        %896 = vmatpush1.msra.mxu0 0.0
        %897 = vmatprep.subr.mxu0 0.0
        %898 = vmatpush1.msra.mxu0 0.0
        %899 = vmatprep.subr.mxu0 0.0
        %900 = vmatpush1.msra.mxu0 0.0
        %901 = vmatprep.subr.mxu0 0.0
        %902 = vmatpush1.msra.mxu0 0.0
        %903 = vmatprep.subr.mxu0 0.0
        %904 = vmatpush1.msra.mxu0 0.0
        %905 = vmatprep.subr.mxu0 0.0
        %906 = vmatpush1.msra.mxu0 0.0
        %907 = vmatprep.subr.mxu0 0.0
        %908 = vmatpush1.msra.mxu0 0.0
        %909 = vmatprep.subr.mxu0 0.0
        %910 = vmatpush1.msra.mxu0 0.0
        %911 = vmatprep.subr.mxu0 0.0
        %912 = vmatpush1.msra.mxu0 0.0
        %913 = vmatprep.subr.mxu0 0.0
        %914 = vmatpush1.msra.mxu0 0.0
        %915 = vmatprep.subr.mxu0 0.0
        %916 = vmatpush1.msra.mxu0 0.0
        %917 = vmatprep.subr.mxu0 0.0
        %918 = vmatpush1.msra.mxu0 0.0
        %919 = vmatprep.subr.mxu0 0.0
        %920 = vmatpush1.msra.mxu0 0.0
        %921 = vmatprep.subr.mxu0 0.0
        %922 = vmatpush1.msra.mxu0 0.0
        %923 = vmatprep.subr.mxu0 0.0
        %924 = vmatpush1.msra.mxu0 0.0
        %925 = vmatprep.subr.mxu0 0.0
        %926 = vmatpush1.msra.mxu0 0.0
        %927 = vmatprep.subr.mxu0 0.0
        %928 = vmatpush1.msra.mxu0 0.0
        %929 = vmatprep.subr.mxu0 0.0
        %930 = vmatpush1.msra.mxu0 0.0
        %931 = vmatprep.subr.mxu0 0.0
        %932 = vmatpush1.msra.mxu0 0.0
        %933 = vmatprep.subr.mxu0 0.0
        %934 = vmatpush1.msra.mxu0 0.0
        %935 = vmatprep.subr.mxu0 0.0
        %936 = vmatpush1.msra.mxu0 0.0
        %937 = vmatprep.subr.mxu0 0.0
        %938 = vmatpush1.msra.mxu0 0.0
        %939 = vmatprep.subr.mxu0 0.0
        %940 = vmatpush1.msra.mxu0 0.0
        %941 = vmatprep.subr.mxu0 0.0
        %942 = vmatpush1.msra.mxu0 0.0
        %943 = vmatprep.subr.mxu0 0.0
        %944 = vmatpush1.msra.mxu0 0.0
        %945 = vmatprep.subr.mxu0 0.0
        %946 = vmatpush1.msra.mxu0 0.0
        %947 = vmatprep.subr.mxu0 0.0
        %948 = vmatpush1.msra.mxu0 0.0
        %949 = vmatprep.mubr.f32.mxu0 0.0
        %950 = vmatmul.mubr.f32.gmra.mrb[0].mxu0 %v874
        %v951 = vpop.f32.mrb[0].mxu0
        %v952 = vadd.f32 1e-05, %v951
        %v953 = vpop.f32.mrb[0].mxu0
        %v954 = vadd.f32 1e-05, %v953
        %955 = vmatprep.mubr.f32.mxu0 0.0
        %956 = vmatmul.mubr.f32.gmra.mrb[0].mxu0 %v877
        %v957 = vpop.f32.mrb[0].mxu0
        %v958 = vadd.f32 1e-05, %v957
        %v959 = vpop.f32.mrb[0].mxu0
        %v960 = vadd.f32 1e-05, %v959
        %961 = vmatprep.mubr.f32.mxu0 0.0
        %962 = vmatmul.mubr.f32.gmra.mrb[0].mxu0 %v880
        %v963 = vpop.f32.mrb[0].mxu0
        %v964 = vadd.f32 1e-05, %v963
        %v965 = vpop.f32.mrb[0].mxu0
        %v966 = vadd.f32 1e-05, %v965
        %967 = vmatprep.mubr.f32.mxu0 0.0
        %968 = vmatmul.mubr.f32.gmra.mrb[0].mxu0 %v883
        %v969 = vpop.f32.mrb[0].mxu0
        %v970 = vadd.f32 1e-05, %v969
        %v971 = vpop.f32.mrb[0].mxu0
        %v972 = vadd.f32 1e-05, %v971
        %973 = vdwg.mxu0
        %974 = vmatprep.subr.mxu0 0.0
        %975 = vmatpush1.msra.mxu0 %v858
        %976 = vmatprep.subr.mxu0 0.0
        %977 = vmatpush1.msra.mxu0 %v861
        %978 = vmatprep.subr.mxu0 0.0
        %979 = vmatpush1.msra.mxu0 %v864
        %980 = vmatprep.subr.mxu0 0.0
        %981 = vmatpush1.msra.mxu0 %v867
        %982 = vmatprep.subr.mxu0 0.0
        %983 = vmatpush1.msra.mxu0 0.0
        %984 = vmatprep.subr.mxu0 0.0
        %985 = vmatpush1.msra.mxu0 0.0
        %986 = vmatprep.subr.mxu0 0.0
        %987 = vmatpush1.msra.mxu0 0.0
        %988 = vmatprep.subr.mxu0 0.0
        %989 = vmatpush1.msra.mxu0 0.0
        %990 = vmatprep.subr.mxu0 0.0
        %991 = vmatpush1.msra.mxu0 0.0
        %992 = vmatprep.subr.mxu0 0.0
        %993 = vmatpush1.msra.mxu0 0.0
        %994 = vmatprep.subr.mxu0 0.0
        %995 = vmatpush1.msra.mxu0 0.0
        %996 = vmatprep.subr.mxu0 0.0
        %997 = vmatpush1.msra.mxu0 0.0
        %998 = vmatprep.subr.mxu0 0.0
        %999 = vmatpush1.msra.mxu0 0.0
        %1000 = vmatprep.subr.mxu0 0.0
        %1001 = vmatpush1.msra.mxu0 0.0
        %1002 = vmatprep.subr.mxu0 0.0
        %1003 = vmatpush1.msra.mxu0 0.0
        %1004 = vmatprep.subr.mxu0 0.0
        %1005 = vmatpush1.msra.mxu0 0.0
        %1006 = vmatprep.subr.mxu0 0.0
        %1007 = vmatpush1.msra.mxu0 0.0
        %1008 = vmatprep.subr.mxu0 0.0
        %1009 = vmatpush1.msra.mxu0 0.0
        %1010 = vmatprep.subr.mxu0 0.0
        %1011 = vmatpush1.msra.mxu0 0.0
        %1012 = vmatprep.subr.mxu0 0.0
        %1013 = vmatpush1.msra.mxu0 0.0
        %1014 = vmatprep.subr.mxu0 0.0
        %1015 = vmatpush1.msra.mxu0 0.0
        %1016 = vmatprep.subr.mxu0 0.0
        %1017 = vmatpush1.msra.mxu0 0.0
        %1018 = vmatprep.subr.mxu0 0.0
        %1019 = vmatpush1.msra.mxu0 0.0
        %1020 = vmatprep.subr.mxu0 0.0
        %1021 = vmatpush1.msra.mxu0 0.0
        %1022 = vmatprep.subr.mxu0 0.0
        %1023 = vmatpush1.msra.mxu0 0.0
        %1024 = vmatprep.subr.mxu0 0.0
        %1025 = vmatpush1.msra.mxu0 0.0
        %1026 = vmatprep.subr.mxu0 0.0
        %1027 = vmatpush1.msra.mxu0 0.0
        %1028 = vmatprep.subr.mxu0 0.0
        %1029 = vmatpush1.msra.mxu0 0.0
        %1030 = vmatprep.subr.mxu0 0.0
        %1031 = vmatpush1.msra.mxu0 0.0
        %1032 = vmatprep.subr.mxu0 0.0
        %1033 = vmatpush1.msra.mxu0 0.0
        %1034 = vmatprep.subr.mxu0 0.0
        %1035 = vmatpush1.msra.mxu0 0.0
        %1036 = vmatprep.subr.mxu0 0.0
        %1037 = vmatpush1.msra.mxu0 0.0
        %1038 = vmatprep.mubr.f32.mxu0 0.0
        %1039 = vmatmul.mubr.f32.gmra.mrb[0].mxu0 %v874
        %v1040 = vpop.f32.mrb[0].mxu0
        %v1041 = vadd.f32 1e-05, %v1040
        %v1042 = vpop.f32.mrb[0].mxu0
        %1043 = vmatprep.mubr.f32.mxu0 0.0
        %1044 = vmatmul.mubr.f32.gmra.mrb[0].mxu0 %v877
        %v1045 = vpop.f32.mrb[0].mxu0
        %v1046 = vadd.f32 1e-05, %v1045
        %v1047 = vpop.f32.mrb[0].mxu0
        %1048 = vmatprep.mubr.f32.mxu0 0.0
        %1049 = vmatmul.mubr.f32.gmra.mrb[0].mxu0 %v880
        %v1050 = vpop.f32.mrb[0].mxu0
        %v1051 = vadd.f32 1e-05, %v1050
        %v1052 = vpop.f32.mrb[0].mxu0
        %1053 = vmatprep.mubr.f32.mxu0 0.0
        %1054 = vmatmul.mubr.f32.gmra.mrb[0].mxu0 %v883
        %v1055 = vpop.f32.mrb[0].mxu0
        %v1056 = vadd.f32 1e-05, %v1055
        %v1057 = vpop.f32.mrb[0].mxu0
        %1058 = vdwg.mxu0
        %v1059 = vrcp.pop %v952
        %v1060 = vrcp.pop %v954
        %v1061 = vrcp.pop %v1041
        %v1062 = vrcp.pop %v958
        %v1063 = vrcp.pop %v960
        %v1064 = vrcp.pop %v1046
        %v1065 = vrcp.pop %v964
        %v1066 = vrcp.pop %v966
        %v1067 = vrcp.pop %v1051
        %v1068 = vrcp.pop %v970
        %v1069 = vrcp.pop %v972
        %v1070 = vrcp.pop %v1056
        %v1071 = vmul.f32 %v856, %v1059
        %v1072 = vmul.f32 %v857, %v1060
        %v1073 = vmul.f32 %v858, %v1061
        %v1074 = vmul.f32 %v859, %v1062
        %v1075 = vmul.f32 %v860, %v1063
        %v1076 = vmul.f32 %v861, %v1064
        %v1077 = vmul.f32 %v862, %v1065
        %v1078 = vmul.f32 %v863, %v1066
        %v1079 = vmul.f32 %v864, %v1067
        %v1080 = vmul.f32 %v865, %v1068
        %v1081 = vmul.f32 %v866, %v1069
        %v1082 = vmul.f32 %v867, %v1070
        %vm1083 = vcmask 154624
        %1084 = vst.msk [vmem:[#allocation3] sm:$0xff] %vm1083, 0.0
        %1085 = vst.msk [vmem:[#allocation3 + $0x18] sm:$0xff] %vm1083, 0.0
        %1086 = vst.msk [vmem:[#allocation3 + $0x30] sm:$0xff] %vm1083, 0.0
        %1087 = vst.msk [vmem:[#allocation3 + $0x48] sm:$0xff] %vm1083, 0.0
        %vm1088 = vcmask 868024
        %1089 = vst.msk [vmem:[#allocation3 + $0x10] sm:$0xff] %vm1088, 0.0
        %1090 = vst.msk [vmem:[#allocation3 + $0x28] sm:$0xff] %vm1088, 0.0
        %1091 = vst.msk [vmem:[#allocation3 + $0x40] sm:$0xff] %vm1088, 0.0
        %1092 = vst.msk [vmem:[#allocation3 + $0x58] sm:$0xff] %vm1088, 0.0
        %1105 = vrot.lane.b32.xlu0 %v1071, 19
        %v1106 = vpop.permute.xlu0 %1105
        %1107 = vrot.lane.b32.xlu0 %v1072, 19
        %v1108 = vpop.permute.xlu0 %1107
        %1109 = vrot.lane.b32.xlu0 %v1073, 19
        %v1110 = vpop.permute.xlu0 %1109
        %1111 = vrot.lane.b32.xlu0 %v1074, 19
        %v1112 = vpop.permute.xlu0 %1111
        %1113 = vrot.lane.b32.xlu0 %v1075, 19
        %v1114 = vpop.permute.xlu0 %1113
        %1115 = vrot.lane.b32.xlu0 %v1076, 19
        %v1116 = vpop.permute.xlu0 %1115
        %1117 = vrot.lane.b32.xlu0 %v1077, 19
        %v1118 = vpop.permute.xlu0 %1117
        %1119 = vrot.lane.b32.xlu0 %v1078, 19
        %v1120 = vpop.permute.xlu0 %1119
        %1121 = vrot.lane.b32.xlu0 %v1079, 19
        %v1122 = vpop.permute.xlu0 %1121
        %1123 = vrot.lane.b32.xlu0 %v1080, 19
        %v1124 = vpop.permute.xlu0 %1123
        %1125 = vrot.lane.b32.xlu0 %v1081, 19
        %v1126 = vpop.permute.xlu0 %1125
        %1127 = vrot.lane.b32.xlu0 %v1082, 19
        %v1128 = vpop.permute.xlu0 %1127
        %v1129 = vsel %vm1083, %v1106, %v1108
        %v1130 = vsel %vm1083, %v1108, %v1110
        %v1131 = vsel %vm1083, %v1112, %v1114
        %v1132 = vsel %vm1083, %v1114, %v1116
        %v1133 = vsel %vm1083, %v1118, %v1120
        %v1134 = vsel %vm1083, %v1120, %v1122
        %v1135 = vsel %vm1083, %v1124, %v1126
        %v1136 = vsel %vm1083, %v1126, %v1128
        %vm1149 = vcmask 1047704
        %1150 = vst.msk [vmem:[#allocation3] sm:$0xff] %vm1149, %v1106
        %1151 = vst [vmem:[#allocation3 + $0x8] sm:$0xff] %v1129
        %vm1152 = vcmask 711680
        %1153 = vst.msk [vmem:[#allocation3 + $0x10] sm:$0xff] %vm1152, %v1130
        %1154 = vst.msk [vmem:[#allocation3 + $0x18] sm:$0xff] %vm1149, %v1112
        %1155 = vst [vmem:[#allocation3 + $0x20] sm:$0xff] %v1131
        %1156 = vst.msk [vmem:[#allocation3 + $0x28] sm:$0xff] %vm1152, %v1132
        %1157 = vst.msk [vmem:[#allocation3 + $0x30] sm:$0xff] %vm1149, %v1118
        %1158 = vst [vmem:[#allocation3 + $0x38] sm:$0xff] %v1133
        %1159 = vst.msk [vmem:[#allocation3 + $0x40] sm:$0xff] %vm1152, %v1134
        %1160 = vst.msk [vmem:[#allocation3 + $0x48] sm:$0xff] %vm1149, %v1124
        %1161 = vst [vmem:[#allocation3 + $0x50] sm:$0xff] %v1135
        %1162 = vst.msk [vmem:[#allocation3 + $0x58] sm:$0xff] %vm1152, %v1136
        %v1163 = vld [vmem:[#allocation3] sm:$0xff]
        %v1164 = vld [vmem:[#allocation3 + $0x8] sm:$0xff]
        %v1165 = vld [vmem:[#allocation3 + $0x10] sm:$0xff]
        %v1166 = vld [vmem:[#allocation3 + $0x18] sm:$0xff]
        %v1167 = vld [vmem:[#allocation3 + $0x20] sm:$0xff]
        %v1168 = vld [vmem:[#allocation3 + $0x28] sm:$0xff]
        %v1169 = vld [vmem:[#allocation3 + $0x30] sm:$0xff]
        %v1170 = vld [vmem:[#allocation3 + $0x38] sm:$0xff]
        %v1171 = vld [vmem:[#allocation3 + $0x40] sm:$0xff]
        %v1172 = vld [vmem:[#allocation3 + $0x48] sm:$0xff]
        %v1173 = vld [vmem:[#allocation3 + $0x50] sm:$0xff]
        %v1174 = vld [vmem:[#allocation3 + $0x58] sm:$0xff]
        %1187 = vrot.lane.b32.xlu0 %v1163, 110
        %v1188 = vpop.permute.xlu0 %1187
        %1189 = vrot.lane.b32.xlu0 %v1164, 110
        %v1190 = vpop.permute.xlu0 %1189
        %1191 = vrot.lane.b32.xlu0 %v1165, 110
        %v1192 = vpop.permute.xlu0 %1191
        %1193 = vrot.lane.b32.xlu0 %v1166, 110
        %v1194 = vpop.permute.xlu0 %1193
        %1195 = vrot.lane.b32.xlu0 %v1167, 110
        %v1196 = vpop.permute.xlu0 %1195
        %1197 = vrot.lane.b32.xlu0 %v1168, 110
        %v1198 = vpop.permute.xlu0 %1197
        %1199 = vrot.lane.b32.xlu0 %v1169, 110
        %v1200 = vpop.permute.xlu0 %1199
        %1201 = vrot.lane.b32.xlu0 %v1170, 110
        %v1202 = vpop.permute.xlu0 %1201
        %1203 = vrot.lane.b32.xlu0 %v1171, 110
        %v1204 = vpop.permute.xlu0 %1203
        %1205 = vrot.lane.b32.xlu0 %v1172, 110
        %v1206 = vpop.permute.xlu0 %1205
        %1207 = vrot.lane.b32.xlu0 %v1173, 110
        %v1208 = vpop.permute.xlu0 %1207
        %1209 = vrot.lane.b32.xlu0 %v1174, 110
        %v1210 = vpop.permute.xlu0 %1209
        %vm1211 = vcmask 900096
        %v1212 = vsel %vm1211, %v1188, %v1190
        %v1213 = vsel %vm1211, %v1190, %v1192
        %v1214 = vsel %vm1211, %v1194, %v1196
        %v1215 = vsel %vm1211, %v1196, %v1198
        %v1216 = vsel %vm1211, %v1200, %v1202
        %v1217 = vsel %vm1211, %v1202, %v1204
        %v1218 = vsel %vm1211, %v1206, %v1208
        %v1219 = vsel %vm1211, %v1208, %v1210
        %v1232 = vadd.f32 %v1163, %v1212
        %v1233 = vadd.f32 %v1164, %v1213
        %v1234 = vadd.f32 %v1165, %v1192
        %v1235 = vadd.f32 %v1166, %v1214
        %v1236 = vadd.f32 %v1167, %v1215
        %v1237 = vadd.f32 %v1168, %v1198
        %v1238 = vadd.f32 %v1169, %v1216
        %v1239 = vadd.f32 %v1170, %v1217
        %v1240 = vadd.f32 %v1171, %v1204
        %v1241 = vadd.f32 %v1172, %v1218
        %v1242 = vadd.f32 %v1173, %v1219
        %v1243 = vadd.f32 %v1174, %v1210
        %1244 = vrot.lane.b32.xlu0 %v1163, 92
        %v1245 = vpop.permute.xlu0 %1244
        %1246 = vrot.lane.b32.xlu0 %v1164, 92
        %v1247 = vpop.permute.xlu0 %1246
        %1248 = vrot.lane.b32.xlu0 %v1165, 92
        %v1249 = vpop.permute.xlu0 %1248
        %1250 = vrot.lane.b32.xlu0 %v1166, 92
        %v1251 = vpop.permute.xlu0 %1250
        %1252 = vrot.lane.b32.xlu0 %v1167, 92
        %v1253 = vpop.permute.xlu0 %1252
        %1254 = vrot.lane.b32.xlu0 %v1168, 92
        %v1255 = vpop.permute.xlu0 %1254
        %1256 = vrot.lane.b32.xlu0 %v1169, 92
        %v1257 = vpop.permute.xlu0 %1256
        %1258 = vrot.lane.b32.xlu0 %v1170, 92
        %v1259 = vpop.permute.xlu0 %1258
        %1260 = vrot.lane.b32.xlu0 %v1171, 92
        %v1261 = vpop.permute.xlu0 %1260
        %1262 = vrot.lane.b32.xlu0 %v1172, 92
        %v1263 = vpop.permute.xlu0 %1262
        %1264 = vrot.lane.b32.xlu0 %v1173, 92
        %v1265 = vpop.permute.xlu0 %1264
        %1266 = vrot.lane.b32.xlu0 %v1174, 92
        %v1267 = vpop.permute.xlu0 %1266
        %vm1268 = vcmask 752640
        %v1269 = vsel %vm1268, %v1245, %v1247
        %v1270 = vsel %vm1268, %v1247, %v1249
        %v1271 = vsel %vm1268, %v1251, %v1253
        %v1272 = vsel %vm1268, %v1253, %v1255
        %v1273 = vsel %vm1268, %v1257, %v1259
        %v1274 = vsel %vm1268, %v1259, %v1261
        %v1275 = vsel %vm1268, %v1263, %v1265
        %v1276 = vsel %vm1268, %v1265, %v1267
        %v1289 = vadd.f32 %v1232, %v1269
        %v1290 = vadd.f32 %v1233, %v1270
        %v1291 = vadd.f32 %v1234, %v1249
        %v1292 = vadd.f32 %v1235, %v1271
        %v1293 = vadd.f32 %v1236, %v1272
        %v1294 = vadd.f32 %v1237, %v1255
        %v1295 = vadd.f32 %v1238, %v1273
        %v1296 = vadd.f32 %v1239, %v1274
        %v1297 = vadd.f32 %v1240, %v1261
        %v1298 = vadd.f32 %v1241, %v1275
        %v1299 = vadd.f32 %v1242, %v1276
        %v1300 = vadd.f32 %v1243, %v1267
        %1313 = vrot.lane.b32.xlu0 %v1289, 127
        %v1314 = vpop.permute.xlu0 %1313
        %1315 = vrot.lane.b32.xlu0 %v1290, 127
        %v1316 = vpop.permute.xlu0 %1315
        %1317 = vrot.lane.b32.xlu0 %v1291, 127
        %v1318 = vpop.permute.xlu0 %1317
        %1319 = vrot.lane.b32.xlu0 %v1292, 127
        %v1320 = vpop.permute.xlu0 %1319
        %1321 = vrot.lane.b32.xlu0 %v1293, 127
        %v1322 = vpop.permute.xlu0 %1321
        %1323 = vrot.lane.b32.xlu0 %v1294, 127
        %v1324 = vpop.permute.xlu0 %1323
        %1325 = vrot.lane.b32.xlu0 %v1295, 127
        %v1326 = vpop.permute.xlu0 %1325
        %1327 = vrot.lane.b32.xlu0 %v1296, 127
        %v1328 = vpop.permute.xlu0 %1327
        %1329 = vrot.lane.b32.xlu0 %v1297, 127
        %v1330 = vpop.permute.xlu0 %1329
        %1331 = vrot.lane.b32.xlu0 %v1298, 127
        %v1332 = vpop.permute.xlu0 %1331
        %1333 = vrot.lane.b32.xlu0 %v1299, 127
        %v1334 = vpop.permute.xlu0 %1333
        %1335 = vrot.lane.b32.xlu0 %v1300, 127
        %v1336 = vpop.permute.xlu0 %1335
        %vm1337 = vcmask 1039360
        %v1338 = vsel %vm1337, %v1314, %v1316
        %v1339 = vsel %vm1337, %v1316, %v1318
        %v1340 = vsel %vm1337, %v1320, %v1322
        %v1341 = vsel %vm1337, %v1322, %v1324
        %v1342 = vsel %vm1337, %v1326, %v1328
        %v1343 = vsel %vm1337, %v1328, %v1330
        %v1344 = vsel %vm1337, %v1332, %v1334
        %v1345 = vsel %vm1337, %v1334, %v1336
        %v1358 = vadd.f32 %v1289, %v1338
        %v1359 = vadd.f32 %v1290, %v1339
        %v1360 = vadd.f32 %v1291, %v1318
        %v1361 = vadd.f32 %v1292, %v1340
        %v1362 = vadd.f32 %v1293, %v1341
        %v1363 = vadd.f32 %v1294, %v1324
        %v1364 = vadd.f32 %v1295, %v1342
        %v1365 = vadd.f32 %v1296, %v1343
        %v1366 = vadd.f32 %v1297, %v1330
        %v1367 = vadd.f32 %v1298, %v1344
        %v1368 = vadd.f32 %v1299, %v1345
        %v1369 = vadd.f32 %v1300, %v1336
        %1370 = vrot.lane.b32.xlu0 %v1289, 126
        %v1371 = vpop.permute.xlu0 %1370
        %1372 = vrot.lane.b32.xlu0 %v1290, 126
        %v1373 = vpop.permute.xlu0 %1372
        %1374 = vrot.lane.b32.xlu0 %v1291, 126
        %v1375 = vpop.permute.xlu0 %1374
        %1376 = vrot.lane.b32.xlu0 %v1292, 126
        %v1377 = vpop.permute.xlu0 %1376
        %1378 = vrot.lane.b32.xlu0 %v1293, 126
        %v1379 = vpop.permute.xlu0 %1378
        %1380 = vrot.lane.b32.xlu0 %v1294, 126
        %v1381 = vpop.permute.xlu0 %1380
        %1382 = vrot.lane.b32.xlu0 %v1295, 126
        %v1383 = vpop.permute.xlu0 %1382
        %1384 = vrot.lane.b32.xlu0 %v1296, 126
        %v1385 = vpop.permute.xlu0 %1384
        %1386 = vrot.lane.b32.xlu0 %v1297, 126
        %v1387 = vpop.permute.xlu0 %1386
        %1388 = vrot.lane.b32.xlu0 %v1298, 126
        %v1389 = vpop.permute.xlu0 %1388
        %1390 = vrot.lane.b32.xlu0 %v1299, 126
        %v1391 = vpop.permute.xlu0 %1390
        %1392 = vrot.lane.b32.xlu0 %v1300, 126
        %v1393 = vpop.permute.xlu0 %1392
        %vm1394 = vcmask 1031168
        %v1395 = vsel %vm1394, %v1371, %v1373
        %v1396 = vsel %vm1394, %v1373, %v1375
        %v1397 = vsel %vm1394, %v1377, %v1379
        %v1398 = vsel %vm1394, %v1379, %v1381
        %v1399 = vsel %vm1394, %v1383, %v1385
        %v1400 = vsel %vm1394, %v1385, %v1387
        %v1401 = vsel %vm1394, %v1389, %v1391
        %v1402 = vsel %vm1394, %v1391, %v1393
        %v1415 = vadd.f32 %v1358, %v1395
        %v1416 = vadd.f32 %v1359, %v1396
        %v1417 = vadd.f32 %v1360, %v1375
        %v1418 = vadd.f32 %v1361, %v1397
        %v1419 = vadd.f32 %v1362, %v1398
        %v1420 = vadd.f32 %v1363, %v1381
        %v1421 = vadd.f32 %v1364, %v1399
        %v1422 = vadd.f32 %v1365, %v1400
        %v1423 = vadd.f32 %v1366, %v1387
        %v1424 = vadd.f32 %v1367, %v1401
        %v1425 = vadd.f32 %v1368, %v1402
        %v1426 = vadd.f32 %v1369, %v1393
        %v1427 = vld [vmem:[%s6] sm:$0x7]
        %v1429 = vlaneseq
        %v1430 = vshrl.u32 %v1429, 7
        %v1431 = vsub.s32 0, %v1430
        %v1432 = vrot.slane %v1427, %v1431
        %v1433 = vlaneseq
        %v1434 = vshrl.u32 %v1433, 7
        %v1435 = vsub.s32 1, %v1434
        %v1436 = vrot.slane %v1427, %v1435
        %v1437 = vlaneseq
        %v1438 = vshrl.u32 %v1437, 7
        %v1439 = vsub.s32 2, %v1438
        %v1440 = vrot.slane %v1427, %v1439
        %v1444 = vmul.f32 %v1415, %v1432
        %v1445 = vmul.f32 %v1416, %v1436
        %v1446 = vmul.f32 %v1417, %v1440
        %v1447 = vmul.f32 %v1418, %v1432
        %v1448 = vmul.f32 %v1419, %v1436
        %v1449 = vmul.f32 %v1420, %v1440
        %v1450 = vmul.f32 %v1421, %v1432
        %v1451 = vmul.f32 %v1422, %v1436
        %v1452 = vmul.f32 %v1423, %v1440
        %v1453 = vmul.f32 %v1424, %v1432
        %v1454 = vmul.f32 %v1425, %v1436
        %v1455 = vmul.f32 %v1426, %v1440
        %1456 = vst [vmem:[%s286] sm:$0xff] %v1444
        %1457 = vst [vmem:[%s286 + $0x8] sm:$0xff] %v1445
        %1458 = vst.msk [vmem:[%s286 + $0x10] sm:$0xff] %vm315, %v1446
        %1459 = vst [vmem:[%s286 + $0x18] sm:$0xff] %v1447
        %1460 = vst [vmem:[%s286 + $0x20] sm:$0xff] %v1448
        %1461 = vst.msk [vmem:[%s286 + $0x28] sm:$0xff] %vm315, %v1449
        %1462 = vst [vmem:[%s286 + $0x30] sm:$0xff] %v1450
        %1463 = vst [vmem:[%s286 + $0x38] sm:$0xff] %v1451
        %1464 = vst.msk [vmem:[%s286 + $0x40] sm:$0xff] %vm315, %v1452
        %1465 = vst [vmem:[%s286 + $0x48] sm:$0xff] %v1453
        %1466 = vst [vmem:[%s286 + $0x50] sm:$0xff] %v1454
        %1467 = vst.msk [vmem:[%s286 + $0x58] sm:$0xff] %vm315, %v1455
        %s1468 = sand.u32 %s182, 1
        %s1469 = scalar_lea.sflag [#allocation6], %s1468
        %s1470 = sand.u32 %s182, 1
        %s1471 = smul.addr %s1470, 96
        %s1472 = scalar_lea.vmem [#allocation7], %s1471
        // Predicated region
        $region53: #{tpu_custom_call.1} parent=47 // pred_check
          %p1473 = pneg %p192
        $region54: #{tpu_custom_call.1} parent=47 // pred_check_branch
          %1475 = sbr.rel (%p1473) target = $region56
        $region55: #{tpu_custom_call.1} parent=47 // pred_region
          %s1477 = ssub.s32 1536, 1536
          %1478 = vsyncadd %s1469, %s1477
          %s1479 = smul.addr %s22, 12
          %s1480 = smul.addr %s1479, 128
          %s1481 = scalar_lea.hbm %s7, %s1480
          %s1482 = sshll.u32 %s1472, 4
          %s1483 = int_to_ptr.vmem [resolvable:$true] %s1482
          %1488 = dma.vmem_to_hbm [thread:$0]  %s1483, 1536, %s1481, %s1469, 384, 384, 24
        $region56: #{tpu_custom_call.1} parent=47 // pred_fallthru
          _
      $region48: #{tpu_custom_call.1} parent=5 // pred_fallthru
        _
      %p1489 = scmp.le.s32.totalorder 2, %s17
      // Predicated region
      $region57: #{tpu_custom_call.1} parent=5 // pred_check
        %p1490 = pneg %p1489
      $region58: #{tpu_custom_call.1} parent=5 // pred_check_branch
        %1492 = sbr.rel (%p1490) target = $region60
      $region59: #{tpu_custom_call.1} parent=5 // pred_region
        %s1493 = ssub.s32 %s17, 2
        // Predicated region
        $region61: #{tpu_custom_call.1} parent=59 // pred_check
          %p1494 = pneg %p198
        $region62: #{tpu_custom_call.1} parent=59 // pred_check_branch
          %1496 = sbr.rel (%p1494) target = $region64
        $region63: #{tpu_custom_call.1} parent=59 // pred_region
          %s1497 = sand.u32 %s183, 1
          %s1498 = scalar_lea.sflag [#allocation6], %s1497
          %s1499 = sand.u32 %s183, 1
          %s1500 = smul.addr %s1499, 96
          %s1501 = scalar_lea.vmem [#allocation7], %s1500
          %1502 = dma.done %s1498, 1536
        $region64: #{tpu_custom_call.1} parent=59 // pred_fallthru
          _
      $region60: #{tpu_custom_call.1} parent=5 // pred_fallthru
        _
    $region6: #{tpu_custom_call.1} parent=1 // loop_footer
      %s21 = sadd.s32 1, %s17
    $region7: #{tpu_custom_call.1} parent=1 // loop_footer_branch
      %16 = sbr.rel target = $region3
    $region8: #{tpu_custom_call.1} parent=1 // loop_exit
      _
    %1503 = vsyncpa [#allocation5], 1
    %s1504 = scalar_lea.sflag [#allocation5], 1
    %1505 = vsyncpa %s1504, 1
    %1506 = vsyncpa [#allocation6], 1
    %s1507 = scalar_lea.sflag [#allocation6], 1
    %1508 = vsyncpa %s1507, 1

</llo_original>
